<compile_context>
chip_gen: v7x
topology: tpu7x:2x2x1
jax: 0.10.0
libtpu: 0.0.40
codegen_flags: <defaults>
</compile_context>

<pallas_src>
import jax
import jax.numpy as jnp
from jax.experimental import pallas as pl
from jax.experimental.pallas import tpu as pltpu


K1 = 784      # input features (28*28), passed at natural width
N_PAD = 128   # padded hidden / output width (lane-dense)


# ------------------------------ Pallas kernel ------------------------------ #

def _pmnist_flipout_kernel(x_ref, s1_ref, sr_ref, w1_ref, w23_ref, b_ref, o_ref):
    # x: (TM, 784) f32, s1: (TM, 784) bf16, sr: (TM, 640) bf16,
    # w1: (784, 256) bf16 = [W1m | W1d], w23: (128, 512) bf16 = [W2m|W2d|W3m|W3d],
    # b:  (8, 128)  f32  rows = [b1m, b1d, b2m, b2d, b3m, b3d, 0, 0]
    x = x_ref[...]                                        # f32
    s1 = s1_ref[...].astype(jnp.float32)                  # +/-1
    sr = sr_ref[...].astype(jnp.float32)                  # +/-1
    s_out1 = sr[:, 0:128]
    s_in2 = sr[:, 128:256]
    s_out2 = sr[:, 256:384]
    s_in3 = sr[:, 384:512]
    s_out3 = sr[:, 512:640]

    # ---- layer 1 (784 -> 100) ----
    x_bf = x.astype(jnp.bfloat16)
    xs_bf = (x * s1).astype(jnp.bfloat16)                 # exact sign flip in f32
    mean1 = jnp.dot(x_bf, w1_ref[:, 0:128], preferred_element_type=jnp.float32)
    pert1 = jnp.dot(xs_bf, w1_ref[:, 128:256], preferred_element_type=jnp.float32)
    h1 = jnp.maximum(mean1 + b_ref[0:1, :] + (pert1 + b_ref[1:2, :]) * s_out1, 0.0)

    # ---- layer 2 (100 -> 100) ----
    h1_bf = h1.astype(jnp.bfloat16)
    h1s_bf = (h1 * s_in2).astype(jnp.bfloat16)
    mean2 = jnp.dot(h1_bf, w23_ref[:, 0:128], preferred_element_type=jnp.float32)
    pert2 = jnp.dot(h1s_bf, w23_ref[:, 128:256], preferred_element_type=jnp.float32)
    h2 = jnp.maximum(mean2 + b_ref[2:3, :] + (pert2 + b_ref[3:4, :]) * s_out2, 0.0)

    # ---- layer 3 (100 -> 10), no ReLU ----
    h2_bf = h2.astype(jnp.bfloat16)
    h2s_bf = (h2 * s_in3).astype(jnp.bfloat16)
    mean3 = jnp.dot(h2_bf, w23_ref[:, 256:384], preferred_element_type=jnp.float32)
    pert3 = jnp.dot(h2s_bf, w23_ref[:, 384:512], preferred_element_type=jnp.float32)
    out = mean3 + b_ref[4:5, :] + (pert3 + b_ref[5:6, :]) * s_out3

    o_ref[...] = out.astype(o_ref.dtype)                  # (TM, 128) f32, lane-dense


def _mlp_flipout_pallas(x_pad, s1, s_rest, w1, w23, biases, tile_m):
    b_pad = x_pad.shape[0]
    grid = (b_pad // tile_m,)

    def row_spec(width):
        return pl.BlockSpec((tile_m, width), lambda i: (i, 0))

    def rep_spec(shape):
        return pl.BlockSpec(shape, lambda i: (0, 0))

    return pl.pallas_call(
        _pmnist_flipout_kernel,
        out_shape=jax.ShapeDtypeStruct((b_pad, N_PAD), jnp.float32),
        grid=grid,
        in_specs=[
            row_spec(K1),                 # x        (TM, 784) f32
            row_spec(K1),                 # s_in1    (TM, 784) bf16
            row_spec(5 * N_PAD),          # s_rest   (TM, 640) bf16
            rep_spec(w1.shape),           # W1 slab  (784, 256) bf16
            rep_spec(w23.shape),          # W2/W3    (128, 512) bf16
            rep_spec(biases.shape),       # biases   (8, 128)   f32
        ],
        out_specs=row_spec(N_PAD),
        compiler_params=pltpu.CompilerParams(
            dimension_semantics=("parallel",),
            vmem_limit_bytes=32 * 1024 * 1024,
        ),
    )(x_pad, s1, s_rest, w1, w23, biases)


# ------------------------------- parameters -------------------------------- #

_LAYER_DIMS = [(784, 100), (100, 100), (100, 10)]   # (in_features, out_features)


def init_params(key):
    """Deterministic synthetic LinearFlipout parameters (PyTorch layout:
    mu_weight/rho_weight are (out, in); biases are (out,))."""
    params = {}
    ks = jax.random.split(key, len(_LAYER_DIMS))
    for li, ((k_in, k_out), k) in enumerate(zip(_LAYER_DIMS, ks)):
        k1, k2 = jax.random.split(k)
        name = f"dense{li + 1}"
        params[f"{name}_mu_weight"] = 0.1 * jax.random.normal(
            k1, (k_out, k_in), dtype=jnp.float32)
        params[f"{name}_rho_weight"] = jnp.full((k_out, k_in), -5.0, jnp.float32)
        params[f"{name}_mu_bias"] = 0.1 * jax.random.normal(
            k2, (k_out,), dtype=jnp.float32)
        params[f"{name}_rho_bias"] = jnp.full((k_out,), -5.0, jnp.float32)
    return params


def _round_up(v, m):
    return (v + m - 1) // m * m


def _choose_tiling(batch):
    """Batch padded to a multiple of 16 (bf16 sublane tile); >=2 grid steps when
    batch > 16 so v7x megacore can split the grid; bigger tiles for big batches."""
    b16 = _round_up(max(batch, 1), 16)
    if b16 <= 1024:
        tile_m = max(16, _round_up((b16 + 1) // 2, 16))
    elif b16 <= 4096:
        tile_m = 256
    else:
        tile_m = 512
    b_pad = _round_up(b16, tile_m)
    return b_pad, tile_m


def _pad_wt(w, rows, cols):
    """(out,in) PyTorch weight -> transposed (in,out) and zero-padded to (rows, cols)."""
    wt = jnp.transpose(w)
    return jnp.pad(wt, ((0, rows - wt.shape[0]), (0, cols - wt.shape[1])))


def _pad_row(b):
    return jnp.pad(b, (0, N_PAD - b.shape[0]))


def _pack_weights(params, keys):
    """Fold flipout Gaussian weight/bias noise, pack into lane-dense slabs."""
    mats, bias_rows = [], []
    for li, (k_in, k_out) in enumerate(_LAYER_DIMS):
        name = f"dense{li + 1}"
        mu_w = params[f"{name}_mu_weight"]
        rho_w = params[f"{name}_rho_weight"]
        mu_b = params[f"{name}_mu_bias"]
        rho_b = params[f"{name}_rho_bias"]
        eps_w = jax.random.normal(keys[2 * li], (k_out, k_in), jnp.float32)
        eps_b = jax.random.normal(keys[2 * li + 1], (k_out,), jnp.float32)
        delta_w = jax.nn.softplus(rho_w) * eps_w
        delta_b = jax.nn.softplus(rho_b) * eps_b
        rows = K1 if li == 0 else N_PAD
        mats.append((_pad_wt(mu_w, rows, N_PAD), _pad_wt(delta_w, rows, N_PAD)))
        bias_rows += [_pad_row(mu_b), _pad_row(delta_b)]

    w1 = jnp.concatenate(list(mats[0]), axis=1).astype(jnp.bfloat16)          # (784, 256)
    w23 = jnp.concatenate(list(mats[1]) + list(mats[2]), axis=1).astype(jnp.bfloat16)  # (128, 512)
    bias_rows += [jnp.zeros((N_PAD,), jnp.float32)] * 2
    biases = jnp.stack(bias_rows).astype(jnp.float32)                         # (8, 128)
    return w1, w23, biases


def _rademacher(key, shape):
    return jnp.where(jax.random.bernoulli(key, 0.5, shape), 1.0, -1.0).astype(jnp.bfloat16)


# -------------------------------- forward ---------------------------------- #

@jax.jit
def model_pmnist_forward(params, x, noise_key):
    """Flatten -> flipout dense1 -> ReLU -> flipout dense2 -> ReLU -> flipout dense3."""
    batch = x.shape[0]
    x2d = x.reshape(batch, -1).astype(jnp.float32)
    assert x2d.shape[1] == K1, "ModelPMNIST expects 28x28 inputs (784 features)"

    b_pad, tile_m = _choose_tiling(batch)

    keys = jax.random.split(noise_key, 8)
    w1, w23, biases = _pack_weights(params, keys[:6])

    # Per-element rademacher signs (flipout): s_in of layer1 is (B, 784);
    # the five 128-wide segments are [s_out1 | s_in2 | s_out2 | s_in3 | s_out3].
    s1 = _rademacher(keys[6], (b_pad, K1))
    s_rest = _rademacher(keys[7], (b_pad, 5 * N_PAD))

    # Only the batch dim is padded; feature width stays 784 and the bf16 cast
    # happens inside the kernel (no extra HBM pass over a padded copy of x).
    x_pad = jnp.pad(x2d, ((0, b_pad - batch), (0, 0)))

    out_pad = _mlp_flipout_pallas(x_pad, s1, s_rest, w1, w23, biases, tile_m)
    return out_pad[:batch, :10]


if __name__ == "__main__":
    key = jax.random.PRNGKey(0)
    k_param, k_x, k_noise = jax.random.split(key, 3)
    params = init_params(k_param)
    # MNIST-shaped input: (B, 1, 28, 28) -> flatten to 784 features.
    x = jax.random.normal(k_x, (2, 1, 28, 28), dtype=jnp.float32)
    out = jax.block_until_ready(model_pmnist_forward(params, x, k_noise))
    assert out.shape == (2, 10) and out.dtype == jnp.float32
    assert bool(jnp.all(jnp.isfinite(out)))
    print("KERNEL_OK")
</pallas_src>

<mosaic_0001>
module attributes {stable_mosaic.version = 11 : i64} {
  func.func @_pmnist_flipout_kernel(%arg0: i32, %arg1: memref<16x784xf32, #tpu.memory_space<vmem>>, %arg2: memref<16x784xbf16, #tpu.memory_space<vmem>>, %arg3: memref<16x640xbf16, #tpu.memory_space<vmem>>, %arg4: memref<784x256xbf16, #tpu.memory_space<vmem>>, %arg5: memref<128x512xbf16, #tpu.memory_space<vmem>>, %arg6: memref<8x128xf32, #tpu.memory_space<vmem>>, %arg7: memref<16x128xf32, #tpu.memory_space<vmem>>) attributes {dimension_semantics = [#tpu.dimension_semantics<parallel>], iteration_bounds = array<i64: 1>, scalar_prefetch = 0 : i64, scratch_operands = 0 : i64, tpu.core_type = #tpu.core_type<tc>, window_params = [{transform_indices = @transform_0, window_bounds = array<i64: 16, 784>}, {transform_indices = @transform_1, window_bounds = array<i64: 16, 784>}, {transform_indices = @transform_2, window_bounds = array<i64: 16, 640>}, {pipeline_mode = #tpu.pipeline_mode<synchronous>, transform_indices = @transform_3, window_bounds = array<i64: 784, 256>}, {pipeline_mode = #tpu.pipeline_mode<synchronous>, transform_indices = @transform_4, window_bounds = array<i64: 128, 512>}, {pipeline_mode = #tpu.pipeline_mode<synchronous>, transform_indices = @transform_5, window_bounds = array<i64: 8, 128>}, {transform_indices = @transform_6, window_bounds = array<i64: 16, 128>}]} {
    %c0 = arith.constant 0 : index
    %c0_0 = arith.constant 0 : index
    %0 = vector.load %arg1[%c0, %c0_0] : memref<16x784xf32, #tpu.memory_space<vmem>>, vector<16x784xf32>
    %c0_1 = arith.constant 0 : index
    %c0_2 = arith.constant 0 : index
    %1 = vector.load %arg2[%c0_1, %c0_2] : memref<16x784xbf16, #tpu.memory_space<vmem>>, vector<16x784xbf16>
    %2 = arith.extf %1 : vector<16x784xbf16> to vector<16x784xf32>
    %c0_3 = arith.constant 0 : index
    %c0_4 = arith.constant 0 : index
    %3 = vector.load %arg3[%c0_3, %c0_4] : memref<16x640xbf16, #tpu.memory_space<vmem>>, vector<16x640xbf16>
    %4 = arith.extf %3 : vector<16x640xbf16> to vector<16x640xf32>
    %5 = vector.extract_strided_slice %4 {offsets = [0, 0], sizes = [16, 128], strides = [1, 1]} : vector<16x640xf32> to vector<16x128xf32>
    %6 = vector.extract_strided_slice %4 {offsets = [0, 128], sizes = [16, 128], strides = [1, 1]} : vector<16x640xf32> to vector<16x128xf32>
    %7 = vector.extract_strided_slice %4 {offsets = [0, 256], sizes = [16, 128], strides = [1, 1]} : vector<16x640xf32> to vector<16x128xf32>
    %8 = vector.extract_strided_slice %4 {offsets = [0, 384], sizes = [16, 128], strides = [1, 1]} : vector<16x640xf32> to vector<16x128xf32>
    %9 = vector.extract_strided_slice %4 {offsets = [0, 512], sizes = [16, 128], strides = [1, 1]} : vector<16x640xf32> to vector<16x128xf32>
    %10 = arith.truncf %0 : vector<16x784xf32> to vector<16x784xbf16>
    %11 = arith.mulf %0, %2 : vector<16x784xf32>
    %12 = arith.truncf %11 : vector<16x784xf32> to vector<16x784xbf16>
    %c0_5 = arith.constant 0 : index
    %c0_6 = arith.constant 0 : index
    %13 = vector.load %arg4[%c0_5, %c0_6] : memref<784x256xbf16, #tpu.memory_space<vmem>>, vector<784x128xbf16>
    %cst = arith.constant dense<0.000000e+00> : vector<16x128xf32>
    %14 = tpu.matmul %10, %13, %cst {dimension_numbers = #tpu.dot_dimension_numbers<[1], [0], [0], [1], [0, 0, 1, 1], [], []>} : vector<16x784xbf16>, vector<784x128xbf16>, vector<16x128xf32> -> vector<16x128xf32>
    %c0_7 = arith.constant 0 : index
    %c128 = arith.constant 128 : index
    %15 = vector.load %arg4[%c0_7, %c128] : memref<784x256xbf16, #tpu.memory_space<vmem>>, vector<784x128xbf16>
    %cst_8 = arith.constant dense<0.000000e+00> : vector<16x128xf32>
    %16 = tpu.matmul %12, %15, %cst_8 {dimension_numbers = #tpu.dot_dimension_numbers<[1], [0], [0], [1], [0, 0, 1, 1], [], []>} : vector<16x784xbf16>, vector<784x128xbf16>, vector<16x128xf32> -> vector<16x128xf32>
    %c0_9 = arith.constant 0 : index
    %c0_10 = arith.constant 0 : index
    %17 = vector.load %arg6[%c0_9, %c0_10] : memref<8x128xf32, #tpu.memory_space<vmem>>, vector<1x128xf32>
    %18 = vector.broadcast %17 : vector<1x128xf32> to vector<16x128xf32>
    %19 = arith.addf %14, %18 : vector<16x128xf32>
    %c1 = arith.constant 1 : index
    %c0_11 = arith.constant 0 : index
    %20 = vector.load %arg6[%c1, %c0_11] : memref<8x128xf32, #tpu.memory_space<vmem>>, vector<1x128xf32>
    %21 = vector.broadcast %20 : vector<1x128xf32> to vector<16x128xf32>
    %22 = arith.addf %16, %21 : vector<16x128xf32>
    %23 = arith.mulf %22, %5 : vector<16x128xf32>
    %24 = arith.addf %19, %23 : vector<16x128xf32>
    %cst_12 = arith.constant 0.000000e+00 : f32
    %25 = vector.broadcast %cst_12 : f32 to vector<16x128xf32>
    %26 = arith.maximumf %24, %25 : vector<16x128xf32>
    %27 = arith.truncf %26 : vector<16x128xf32> to vector<16x128xbf16>
    %28 = arith.mulf %26, %6 : vector<16x128xf32>
    %29 = arith.truncf %28 : vector<16x128xf32> to vector<16x128xbf16>
    %c0_13 = arith.constant 0 : index
    %c0_14 = arith.constant 0 : index
    %30 = vector.load %arg5[%c0_13, %c0_14] : memref<128x512xbf16, #tpu.memory_space<vmem>>, vector<128x128xbf16>
    %cst_15 = arith.constant dense<0.000000e+00> : vector<16x128xf32>
    %31 = tpu.matmul %27, %30, %cst_15 {dimension_numbers = #tpu.dot_dimension_numbers<[1], [0], [0], [1], [0, 0, 1, 1], [], []>} : vector<16x128xbf16>, vector<128x128xbf16>, vector<16x128xf32> -> vector<16x128xf32>
    %c0_16 = arith.constant 0 : index
    %c128_17 = arith.constant 128 : index
    %32 = vector.load %arg5[%c0_16, %c128_17] : memref<128x512xbf16, #tpu.memory_space<vmem>>, vector<128x128xbf16>
    %cst_18 = arith.constant dense<0.000000e+00> : vector<16x128xf32>
    %33 = tpu.matmul %29, %32, %cst_18 {dimension_numbers = #tpu.dot_dimension_numbers<[1], [0], [0], [1], [0, 0, 1, 1], [], []>} : vector<16x128xbf16>, vector<128x128xbf16>, vector<16x128xf32> -> vector<16x128xf32>
    %c2 = arith.constant 2 : index
    %c0_19 = arith.constant 0 : index
    %34 = vector.load %arg6[%c2, %c0_19] : memref<8x128xf32, #tpu.memory_space<vmem>>, vector<1x128xf32>
    %35 = vector.broadcast %34 : vector<1x128xf32> to vector<16x128xf32>
    %36 = arith.addf %31, %35 : vector<16x128xf32>
    %c3 = arith.constant 3 : index
    %c0_20 = arith.constant 0 : index
    %37 = vector.load %arg6[%c3, %c0_20] : memref<8x128xf32, #tpu.memory_space<vmem>>, vector<1x128xf32>
    %38 = vector.broadcast %37 : vector<1x128xf32> to vector<16x128xf32>
    %39 = arith.addf %33, %38 : vector<16x128xf32>
    %40 = arith.mulf %39, %7 : vector<16x128xf32>
    %41 = arith.addf %36, %40 : vector<16x128xf32>
    %cst_21 = arith.constant 0.000000e+00 : f32
    %42 = vector.broadcast %cst_21 : f32 to vector<16x128xf32>
    %43 = arith.maximumf %41, %42 : vector<16x128xf32>
    %44 = arith.truncf %43 : vector<16x128xf32> to vector<16x128xbf16>
    %45 = arith.mulf %43, %8 : vector<16x128xf32>
    %46 = arith.truncf %45 : vector<16x128xf32> to vector<16x128xbf16>
    %c0_22 = arith.constant 0 : index
    %c256 = arith.constant 256 : index
    %47 = vector.load %arg5[%c0_22, %c256] : memref<128x512xbf16, #tpu.memory_space<vmem>>, vector<128x128xbf16>
    %cst_23 = arith.constant dense<0.000000e+00> : vector<16x128xf32>
    %48 = tpu.matmul %44, %47, %cst_23 {dimension_numbers = #tpu.dot_dimension_numbers<[1], [0], [0], [1], [0, 0, 1, 1], [], []>} : vector<16x128xbf16>, vector<128x128xbf16>, vector<16x128xf32> -> vector<16x128xf32>
    %c0_24 = arith.constant 0 : index
    %c384 = arith.constant 384 : index
    %49 = vector.load %arg5[%c0_24, %c384] : memref<128x512xbf16, #tpu.memory_space<vmem>>, vector<128x128xbf16>
    %cst_25 = arith.constant dense<0.000000e+00> : vector<16x128xf32>
    %50 = tpu.matmul %46, %49, %cst_25 {dimension_numbers = #tpu.dot_dimension_numbers<[1], [0], [0], [1], [0, 0, 1, 1], [], []>} : vector<16x128xbf16>, vector<128x128xbf16>, vector<16x128xf32> -> vector<16x128xf32>
    %c4 = arith.constant 4 : index
    %c0_26 = arith.constant 0 : index
    %51 = vector.load %arg6[%c4, %c0_26] : memref<8x128xf32, #tpu.memory_space<vmem>>, vector<1x128xf32>
    %52 = vector.broadcast %51 : vector<1x128xf32> to vector<16x128xf32>
    %53 = arith.addf %48, %52 : vector<16x128xf32>
    %c5 = arith.constant 5 : index
    %c0_27 = arith.constant 0 : index
    %54 = vector.load %arg6[%c5, %c0_27] : memref<8x128xf32, #tpu.memory_space<vmem>>, vector<1x128xf32>
    %55 = vector.broadcast %54 : vector<1x128xf32> to vector<16x128xf32>
    %56 = arith.addf %50, %55 : vector<16x128xf32>
    %57 = arith.mulf %56, %9 : vector<16x128xf32>
    %58 = arith.addf %53, %57 : vector<16x128xf32>
    %c0_28 = arith.constant 0 : index
    %c0_29 = arith.constant 0 : index
    %59 = vector.load %arg7[%c0_28, %c0_29] : memref<16x128xf32, #tpu.memory_space<vmem>>, vector<16x128xf32>
    tpu.vector_store %arg7[%c0_28, %c0_29], %58 {strides = array<i32>} : memref<16x128xf32, #tpu.memory_space<vmem>>, vector<16x128xf32>,
    return
  }
  func.func @transform_0(%arg0: i32) -> (i32, i32) {
    %c0_i32 = arith.constant 0 : i32
    %c0_i32_0 = arith.constant 0 : i32
    return %arg0, %c0_i32 : i32, i32
  }
  func.func @transform_1(%arg0: i32) -> (i32, i32) {
    %c0_i32 = arith.constant 0 : i32
    %c0_i32_0 = arith.constant 0 : i32
    return %arg0, %c0_i32 : i32, i32
  }
  func.func @transform_2(%arg0: i32) -> (i32, i32) {
    %c0_i32 = arith.constant 0 : i32
    %c0_i32_0 = arith.constant 0 : i32
    return %arg0, %c0_i32 : i32, i32
  }
  func.func @transform_3(%arg0: i32) -> (i32, i32) {
    %c0_i32 = arith.constant 0 : i32
    %c0_i32_0 = arith.constant 0 : i32
    %c0_i32_1 = arith.constant 0 : i32
    return %c0_i32, %c0_i32_0 : i32, i32
  }
  func.func @transform_4(%arg0: i32) -> (i32, i32) {
    %c0_i32 = arith.constant 0 : i32
    %c0_i32_0 = arith.constant 0 : i32
    %c0_i32_1 = arith.constant 0 : i32
    return %c0_i32, %c0_i32_0 : i32, i32
  }
  func.func @transform_5(%arg0: i32) -> (i32, i32) {
    %c0_i32 = arith.constant 0 : i32
    %c0_i32_0 = arith.constant 0 : i32
    %c0_i32_1 = arith.constant 0 : i32
    return %c0_i32, %c0_i32_0 : i32, i32
  }
  func.func @transform_6(%arg0: i32) -> (i32, i32) {
    %c0_i32 = arith.constant 0 : i32
    %c0_i32_0 = arith.constant 0 : i32
    return %arg0, %c0_i32 : i32, i32
  }
}

</mosaic_0001>

<llo_original>
// kernel: model_pmnist_forward.3
$region0: #{model_pmnist_forward.3}
  #allocation0 [shape = 'u32[]', space=smem, size = 0x4, offset = 0x4, fixed_abs, tag = 'smem constant byte address 0x4 - core index']
  #allocation1 [shape = 'u32[144,128]{1,0:T(1,128)}', space=vmem, size = 0x12000, scoped, tag = 'internal scratch']
  %s0 = inlined_call_operand.vmem [shape: f32[16,784], index: 0, kind: input, shape index: {}]
  %s1 = inlined_call_operand.vmem [shape: bf16[16,784], index: 1, kind: input, shape index: {}]
  %s2 = inlined_call_operand.vmem [shape: bf16[16,640], index: 2, kind: input, shape index: {}]
  %s3 = inlined_call_operand.vmem [shape: bf16[784,256], index: 3, kind: input, shape index: {}]
  %s4 = inlined_call_operand.vmem [shape: bf16[128,512], index: 4, kind: input, shape index: {}]
  %s5 = inlined_call_operand.vmem [shape: f32[8,128], index: 5, kind: input, shape index: {}]
  %s6 = inlined_call_operand.vmem [shape: f32[16,128], index: 6, kind: output, shape index: {}]
  %s7 = sld [smem:[#allocation0]]
  $region34: #{model_pmnist_forward.3} parent=0
    _
  %s9 = ssub.s32 1, %s7
  %s10 = scalar_select 0, %s9, %s7
  // Predicated region
  $region2: #{model_pmnist_forward.3} parent=0 // pred_check
    _
  $region3: #{model_pmnist_forward.3} parent=0 // pred_check_branch
    %12 = sbr.rel (0) target = $region5
  $region4: #{model_pmnist_forward.3} parent=0 // pred_region
    _
  $region5: #{model_pmnist_forward.3} parent=0 // pred_fallthru
    _
  // Predicated region
  $region6: #{model_pmnist_forward.3} parent=0 // pred_check
    _
  $region7: #{model_pmnist_forward.3} parent=0 // pred_check_branch
    %14 = sbr.rel (0) target = $region9
  $region8: #{model_pmnist_forward.3} parent=0 // pred_region
    _
  $region9: #{model_pmnist_forward.3} parent=0 // pred_fallthru
    _
  // Predicated region
  $region10: #{model_pmnist_forward.3} parent=0 // pred_check
    _
  $region11: #{model_pmnist_forward.3} parent=0 // pred_check_branch
    %16 = sbr.rel (0) target = $region13
  $region12: #{model_pmnist_forward.3} parent=0 // pred_region
    _
  $region13: #{model_pmnist_forward.3} parent=0 // pred_fallthru
    _
  // Predicated region
  $region14: #{model_pmnist_forward.3} parent=0 // pred_check
    _
  $region15: #{model_pmnist_forward.3} parent=0 // pred_check_branch
    %18 = sbr.rel (0) target = $region17
  $region16: #{model_pmnist_forward.3} parent=0 // pred_region
    _
  $region17: #{model_pmnist_forward.3} parent=0 // pred_fallthru
    _
  // Predicated region
  $region18: #{model_pmnist_forward.3} parent=0 // pred_check
    _
  $region19: #{model_pmnist_forward.3} parent=0 // pred_check_branch
    %20 = sbr.rel (0) target = $region21
  $region20: #{model_pmnist_forward.3} parent=0 // pred_region
    _
  $region21: #{model_pmnist_forward.3} parent=0 // pred_fallthru
    _
  // Predicated region
  $region22: #{model_pmnist_forward.3} parent=0 // pred_check
    _
  $region23: #{model_pmnist_forward.3} parent=0 // pred_check_branch
    %22 = sbr.rel (0) target = $region25
  $region24: #{model_pmnist_forward.3} parent=0 // pred_region
    _
  $region25: #{model_pmnist_forward.3} parent=0 // pred_fallthru
    _
  %v24 = vld [vmem:[%s0] sm:$0xff]
  %v25 = vld [vmem:[%s0 + $0x8] sm:$0xff]
  %v26 = vld [vmem:[%s0 + $0x10] sm:$0xff]
  %v27 = vld [vmem:[%s0 + $0x18] sm:$0xff]
  %v28 = vld [vmem:[%s0 + $0x20] sm:$0xff]
  %v29 = vld [vmem:[%s0 + $0x28] sm:$0xff]
  %v30 = vld [vmem:[%s0 + $0x30] sm:$0xff]
  %v31 = vld [vmem:[%s0 + $0x38] sm:$0xff]
  %v32 = vld [vmem:[%s0 + $0x40] sm:$0xff]
  %v33 = vld [vmem:[%s0 + $0x48] sm:$0xff]
  %v34 = vld [vmem:[%s0 + $0x50] sm:$0xff]
  %v35 = vld [vmem:[%s0 + $0x58] sm:$0xff]
  %v36 = vld [vmem:[%s0 + $0x60] sm:$0xff]
  %v37 = vld [vmem:[%s0 + $0x68] sm:$0xff]
  %v38 = vld [vmem:[%s1] sm:$0xff]
  %v39 = vld [vmem:[%s1 + $0x8] sm:$0xff]
  %v40 = vld [vmem:[%s1 + $0x10] sm:$0xff]
  %v41 = vld [vmem:[%s1 + $0x18] sm:$0xf]
  %v42 = vld [vmem:[%s1 + $0x1c] sm:$0xff]
  %v43 = vld [vmem:[%s1 + $0x24] sm:$0xff]
  %v44 = vld [vmem:[%s1 + $0x2c] sm:$0xff]
  %v45 = vld [vmem:[%s1 + $0x34] sm:$0xf]
  %v46 = vunpack.c.l.bf16 %v38
  %v47 = vunpack.c.h.bf16 %v38
  %v48 = vunpack.c.l.bf16 %v39
  %v49 = vunpack.c.h.bf16 %v39
  %v50 = vunpack.c.l.bf16 %v40
  %v51 = vunpack.c.h.bf16 %v40
  %v52 = vunpack.c.l.bf16 %v41
  %v53 = vunpack.c.l.bf16 %v42
  %v54 = vunpack.c.h.bf16 %v42
  %v55 = vunpack.c.l.bf16 %v43
  %v56 = vunpack.c.h.bf16 %v43
  %v57 = vunpack.c.l.bf16 %v44
  %v58 = vunpack.c.h.bf16 %v44
  %v59 = vunpack.c.l.bf16 %v45
  %v60 = vld [vmem:[%s2] sm:$0xff]
  %v61 = vld [vmem:[%s2 + $0x8] sm:$0xff]
  %v62 = vld [vmem:[%s2 + $0x10] sm:$0xf]
  %v63 = vld [vmem:[%s2 + $0x14] sm:$0xff]
  %v64 = vld [vmem:[%s2 + $0x1c] sm:$0xff]
  %v65 = vld [vmem:[%s2 + $0x24] sm:$0xf]
  %v66 = vunpack.c.l.bf16 %v60
  %v67 = vunpack.c.h.bf16 %v60
  %v68 = vunpack.c.l.bf16 %v61
  %v69 = vunpack.c.h.bf16 %v61
  %v70 = vunpack.c.l.bf16 %v62
  %v71 = vunpack.c.l.bf16 %v63
  %v72 = vunpack.c.h.bf16 %v63
  %v73 = vunpack.c.l.bf16 %v64
  %v74 = vunpack.c.h.bf16 %v64
  %v75 = vunpack.c.l.bf16 %v65
  %v76 = vpack.c.bf16 %v31, %v24
  %v77 = vpack.c.bf16 %v32, %v25
  %v78 = vpack.c.bf16 %v33, %v26
  %v79 = vpack.c.bf16 %v34, %v27
  %v80 = vpack.c.bf16 %v35, %v28
  %v81 = vpack.c.bf16 %v36, %v29
  %v82 = vpack.c.bf16 %v37, %v30
  %v83 = vmul.f32 %v24, %v46
  %v84 = vmul.f32 %v25, %v47
  %v85 = vmul.f32 %v26, %v48
  %v86 = vmul.f32 %v27, %v49
  %v87 = vmul.f32 %v28, %v50
  %v88 = vmul.f32 %v29, %v51
  %v89 = vmul.f32 %v30, %v52
  %v90 = vmul.f32 %v31, %v53
  %v91 = vmul.f32 %v32, %v54
  %v92 = vmul.f32 %v33, %v55
  %v93 = vmul.f32 %v34, %v56
  %v94 = vmul.f32 %v35, %v57
  %v95 = vmul.f32 %v36, %v58
  %v96 = vmul.f32 %v37, %v59
  %v97 = vpack.c.bf16 %v90, %v83
  %v98 = vpack.c.bf16 %v91, %v84
  %v99 = vpack.c.bf16 %v92, %v85
  %v100 = vpack.c.bf16 %v93, %v86
  %v101 = vpack.c.bf16 %v94, %v87
  %v102 = vpack.c.bf16 %v95, %v88
  %v103 = vpack.c.bf16 %v96, %v89
  %v104 = vld [vmem:[%s3] sm:$0xf]
  %v105 = vld [vmem:[%s3 + $0x8] sm:$0xf]
  %v106 = vld [vmem:[%s3 + $0x10] sm:$0xf]
  %v107 = vld [vmem:[%s3 + $0x18] sm:$0xf]
  %v108 = vld [vmem:[%s3 + $0x20] sm:$0xf]
  %v109 = vld [vmem:[%s3 + $0x28] sm:$0xf]
  %v110 = vld [vmem:[%s3 + $0x30] sm:$0xf]
  %v111 = vld [vmem:[%s3 + $0x38] sm:$0xf]
  %v112 = vld [vmem:[%s3 + $0x40] sm:$0xf]
  %v113 = vld [vmem:[%s3 + $0x48] sm:$0xf]
  %v114 = vld [vmem:[%s3 + $0x50] sm:$0xf]
  %v115 = vld [vmem:[%s3 + $0x58] sm:$0xf]
  %v116 = vld [vmem:[%s3 + $0x60] sm:$0xf]
  %v117 = vld [vmem:[%s3 + $0x68] sm:$0xf]
  %v118 = vld [vmem:[%s3 + $0x70] sm:$0xf]
  %v119 = vld [vmem:[%s3 + $0x78] sm:$0xf]
  %v120 = vld [vmem:[%s3 + $0x80] sm:$0xf]
  %v121 = vld [vmem:[%s3 + $0x88] sm:$0xf]
  %v122 = vld [vmem:[%s3 + $0x90] sm:$0xf]
  %v123 = vld [vmem:[%s3 + $0x98] sm:$0xf]
  %v124 = vld [vmem:[%s3 + $0xa0] sm:$0xf]
  %v125 = vld [vmem:[%s3 + $0xa8] sm:$0xf]
  %v126 = vld [vmem:[%s3 + $0xb0] sm:$0xf]
  %v127 = vld [vmem:[%s3 + $0xb8] sm:$0xf]
  %v128 = vld [vmem:[%s3 + $0xc0] sm:$0xf]
  %v129 = vld [vmem:[%s3 + $0xc8] sm:$0xf]
  %v130 = vld [vmem:[%s3 + $0xd0] sm:$0xf]
  %v131 = vld [vmem:[%s3 + $0xd8] sm:$0xf]
  %v132 = vld [vmem:[%s3 + $0xe0] sm:$0xf]
  %v133 = vld [vmem:[%s3 + $0xe8] sm:$0xf]
  %v134 = vld [vmem:[%s3 + $0xf0] sm:$0xf]
  %v135 = vld [vmem:[%s3 + $0xf8] sm:$0xf]
  %v136 = vld [vmem:[%s3 + $0x100] sm:$0xf]
  %v137 = vld [vmem:[%s3 + $0x108] sm:$0xf]
  %v138 = vld [vmem:[%s3 + $0x110] sm:$0xf]
  %v139 = vld [vmem:[%s3 + $0x118] sm:$0xf]
  %v140 = vld [vmem:[%s3 + $0x120] sm:$0xf]
  %v141 = vld [vmem:[%s3 + $0x128] sm:$0xf]
  %v142 = vld [vmem:[%s3 + $0x130] sm:$0xf]
  %v143 = vld [vmem:[%s3 + $0x138] sm:$0xf]
  %v144 = vld [vmem:[%s3 + $0x140] sm:$0xf]
  %v145 = vld [vmem:[%s3 + $0x148] sm:$0xf]
  %v146 = vld [vmem:[%s3 + $0x150] sm:$0xf]
  %v147 = vld [vmem:[%s3 + $0x158] sm:$0xf]
  %v148 = vld [vmem:[%s3 + $0x160] sm:$0xf]
  %v149 = vld [vmem:[%s3 + $0x168] sm:$0xf]
  %v150 = vld [vmem:[%s3 + $0x170] sm:$0xf]
  %v151 = vld [vmem:[%s3 + $0x178] sm:$0xf]
  %v152 = vld [vmem:[%s3 + $0x180] sm:$0xf]
  %v153 = vld [vmem:[%s3 + $0x188] sm:$0xf]
  %v154 = vld [vmem:[%s3 + $0x190] sm:$0xf]
  %v155 = vld [vmem:[%s3 + $0x198] sm:$0xf]
  %v156 = vld [vmem:[%s3 + $0x1a0] sm:$0xf]
  %v157 = vld [vmem:[%s3 + $0x1a8] sm:$0xf]
  %v158 = vld [vmem:[%s3 + $0x1b0] sm:$0xf]
  %v159 = vld [vmem:[%s3 + $0x1b8] sm:$0xf]
  %v160 = vld [vmem:[%s3 + $0x1c0] sm:$0xf]
  %v161 = vld [vmem:[%s3 + $0x1c8] sm:$0xf]
  %v162 = vld [vmem:[%s3 + $0x1d0] sm:$0xf]
  %v163 = vld [vmem:[%s3 + $0x1d8] sm:$0xf]
  %v164 = vld [vmem:[%s3 + $0x1e0] sm:$0xf]
  %v165 = vld [vmem:[%s3 + $0x1e8] sm:$0xf]
  %v166 = vld [vmem:[%s3 + $0x1f0] sm:$0xf]
  %v167 = vld [vmem:[%s3 + $0x1f8] sm:$0xf]
  %v168 = vld [vmem:[%s3 + $0x200] sm:$0xf]
  %v169 = vld [vmem:[%s3 + $0x208] sm:$0xf]
  %v170 = vld [vmem:[%s3 + $0x210] sm:$0xf]
  %v171 = vld [vmem:[%s3 + $0x218] sm:$0xf]
  %v172 = vld [vmem:[%s3 + $0x220] sm:$0xf]
  %v173 = vld [vmem:[%s3 + $0x228] sm:$0xf]
  %v174 = vld [vmem:[%s3 + $0x230] sm:$0xf]
  %v175 = vld [vmem:[%s3 + $0x238] sm:$0xf]
  %v176 = vld [vmem:[%s3 + $0x240] sm:$0xf]
  %v177 = vld [vmem:[%s3 + $0x248] sm:$0xf]
  %v178 = vld [vmem:[%s3 + $0x250] sm:$0xf]
  %v179 = vld [vmem:[%s3 + $0x258] sm:$0xf]
  %v180 = vld [vmem:[%s3 + $0x260] sm:$0xf]
  %v181 = vld [vmem:[%s3 + $0x268] sm:$0xf]
  %v182 = vld [vmem:[%s3 + $0x270] sm:$0xf]
  %v183 = vld [vmem:[%s3 + $0x278] sm:$0xf]
  %v184 = vld [vmem:[%s3 + $0x280] sm:$0xf]
  %v185 = vld [vmem:[%s3 + $0x288] sm:$0xf]
  %v186 = vld [vmem:[%s3 + $0x290] sm:$0xf]
  %v187 = vld [vmem:[%s3 + $0x298] sm:$0xf]
  %v188 = vld [vmem:[%s3 + $0x2a0] sm:$0xf]
  %v189 = vld [vmem:[%s3 + $0x2a8] sm:$0xf]
  %v190 = vld [vmem:[%s3 + $0x2b0] sm:$0xf]
  %v191 = vld [vmem:[%s3 + $0x2b8] sm:$0xf]
  %v192 = vld [vmem:[%s3 + $0x2c0] sm:$0xf]
  %v193 = vld [vmem:[%s3 + $0x2c8] sm:$0xf]
  %v194 = vld [vmem:[%s3 + $0x2d0] sm:$0xf]
  %v195 = vld [vmem:[%s3 + $0x2d8] sm:$0xf]
  %v196 = vld [vmem:[%s3 + $0x2e0] sm:$0xf]
  %v197 = vld [vmem:[%s3 + $0x2e8] sm:$0xf]
  %v198 = vld [vmem:[%s3 + $0x2f0] sm:$0xf]
  %v199 = vld [vmem:[%s3 + $0x2f8] sm:$0xf]
  %v200 = vld [vmem:[%s3 + $0x300] sm:$0xf]
  %v201 = vld [vmem:[%s3 + $0x308] sm:$0xf]
  %v202 = vld [vmem:[%s3 + $0x4] sm:$0xf]
  %v203 = vld [vmem:[%s3 + $0xc] sm:$0xf]
  %v204 = vld [vmem:[%s3 + $0x14] sm:$0xf]
  %v205 = vld [vmem:[%s3 + $0x1c] sm:$0xf]
  %v206 = vld [vmem:[%s3 + $0x24] sm:$0xf]
  %v207 = vld [vmem:[%s3 + $0x2c] sm:$0xf]
  %v208 = vld [vmem:[%s3 + $0x34] sm:$0xf]
  %v209 = vld [vmem:[%s3 + $0x3c] sm:$0xf]
  %v210 = vld [vmem:[%s3 + $0x44] sm:$0xf]
  %v211 = vld [vmem:[%s3 + $0x4c] sm:$0xf]
  %v212 = vld [vmem:[%s3 + $0x54] sm:$0xf]
  %v213 = vld [vmem:[%s3 + $0x5c] sm:$0xf]
  %v214 = vld [vmem:[%s3 + $0x64] sm:$0xf]
  %v215 = vld [vmem:[%s3 + $0x6c] sm:$0xf]
  %v216 = vld [vmem:[%s3 + $0x74] sm:$0xf]
  %v217 = vld [vmem:[%s3 + $0x7c] sm:$0xf]
  %v218 = vld [vmem:[%s3 + $0x84] sm:$0xf]
  %v219 = vld [vmem:[%s3 + $0x8c] sm:$0xf]
  %v220 = vld [vmem:[%s3 + $0x94] sm:$0xf]
  %v221 = vld [vmem:[%s3 + $0x9c] sm:$0xf]
  %v222 = vld [vmem:[%s3 + $0xa4] sm:$0xf]
  %v223 = vld [vmem:[%s3 + $0xac] sm:$0xf]
  %v224 = vld [vmem:[%s3 + $0xb4] sm:$0xf]
  %v225 = vld [vmem:[%s3 + $0xbc] sm:$0xf]
  %v226 = vld [vmem:[%s3 + $0xc4] sm:$0xf]
  %v227 = vld [vmem:[%s3 + $0xcc] sm:$0xf]
  %v228 = vld [vmem:[%s3 + $0xd4] sm:$0xf]
  %v229 = vld [vmem:[%s3 + $0xdc] sm:$0xf]
  %v230 = vld [vmem:[%s3 + $0xe4] sm:$0xf]
  %v231 = vld [vmem:[%s3 + $0xec] sm:$0xf]
  %v232 = vld [vmem:[%s3 + $0xf4] sm:$0xf]
  %v233 = vld [vmem:[%s3 + $0xfc] sm:$0xf]
  %v234 = vld [vmem:[%s3 + $0x104] sm:$0xf]
  %v235 = vld [vmem:[%s3 + $0x10c] sm:$0xf]
  %v236 = vld [vmem:[%s3 + $0x114] sm:$0xf]
  %v237 = vld [vmem:[%s3 + $0x11c] sm:$0xf]
  %v238 = vld [vmem:[%s3 + $0x124] sm:$0xf]
  %v239 = vld [vmem:[%s3 + $0x12c] sm:$0xf]
  %v240 = vld [vmem:[%s3 + $0x134] sm:$0xf]
  %v241 = vld [vmem:[%s3 + $0x13c] sm:$0xf]
  %v242 = vld [vmem:[%s3 + $0x144] sm:$0xf]
  %v243 = vld [vmem:[%s3 + $0x14c] sm:$0xf]
  %v244 = vld [vmem:[%s3 + $0x154] sm:$0xf]
  %v245 = vld [vmem:[%s3 + $0x15c] sm:$0xf]
  %v246 = vld [vmem:[%s3 + $0x164] sm:$0xf]
  %v247 = vld [vmem:[%s3 + $0x16c] sm:$0xf]
  %v248 = vld [vmem:[%s3 + $0x174] sm:$0xf]
  %v249 = vld [vmem:[%s3 + $0x17c] sm:$0xf]
  %v250 = vld [vmem:[%s3 + $0x184] sm:$0xf]
  %v251 = vld [vmem:[%s3 + $0x18c] sm:$0xf]
  %v252 = vld [vmem:[%s3 + $0x194] sm:$0xf]
  %v253 = vld [vmem:[%s3 + $0x19c] sm:$0xf]
  %v254 = vld [vmem:[%s3 + $0x1a4] sm:$0xf]
  %v255 = vld [vmem:[%s3 + $0x1ac] sm:$0xf]
  %v256 = vld [vmem:[%s3 + $0x1b4] sm:$0xf]
  %v257 = vld [vmem:[%s3 + $0x1bc] sm:$0xf]
  %v258 = vld [vmem:[%s3 + $0x1c4] sm:$0xf]
  %v259 = vld [vmem:[%s3 + $0x1cc] sm:$0xf]
  %v260 = vld [vmem:[%s3 + $0x1d4] sm:$0xf]
  %v261 = vld [vmem:[%s3 + $0x1dc] sm:$0xf]
  %v262 = vld [vmem:[%s3 + $0x1e4] sm:$0xf]
  %v263 = vld [vmem:[%s3 + $0x1ec] sm:$0xf]
  %v264 = vld [vmem:[%s3 + $0x1f4] sm:$0xf]
  %v265 = vld [vmem:[%s3 + $0x1fc] sm:$0xf]
  %v266 = vld [vmem:[%s3 + $0x204] sm:$0xf]
  %v267 = vld [vmem:[%s3 + $0x20c] sm:$0xf]
  %v268 = vld [vmem:[%s3 + $0x214] sm:$0xf]
  %v269 = vld [vmem:[%s3 + $0x21c] sm:$0xf]
  %v270 = vld [vmem:[%s3 + $0x224] sm:$0xf]
  %v271 = vld [vmem:[%s3 + $0x22c] sm:$0xf]
  %v272 = vld [vmem:[%s3 + $0x234] sm:$0xf]
  %v273 = vld [vmem:[%s3 + $0x23c] sm:$0xf]
  %v274 = vld [vmem:[%s3 + $0x244] sm:$0xf]
  %v275 = vld [vmem:[%s3 + $0x24c] sm:$0xf]
  %v276 = vld [vmem:[%s3 + $0x254] sm:$0xf]
  %v277 = vld [vmem:[%s3 + $0x25c] sm:$0xf]
  %v278 = vld [vmem:[%s3 + $0x264] sm:$0xf]
  %v279 = vld [vmem:[%s3 + $0x26c] sm:$0xf]
  %v280 = vld [vmem:[%s3 + $0x274] sm:$0xf]
  %v281 = vld [vmem:[%s3 + $0x27c] sm:$0xf]
  %v282 = vld [vmem:[%s3 + $0x284] sm:$0xf]
  %v283 = vld [vmem:[%s3 + $0x28c] sm:$0xf]
  %v284 = vld [vmem:[%s3 + $0x294] sm:$0xf]
  %v285 = vld [vmem:[%s3 + $0x29c] sm:$0xf]
  %v286 = vld [vmem:[%s3 + $0x2a4] sm:$0xf]
  %v287 = vld [vmem:[%s3 + $0x2ac] sm:$0xf]
  %v288 = vld [vmem:[%s3 + $0x2b4] sm:$0xf]
  %v289 = vld [vmem:[%s3 + $0x2bc] sm:$0xf]
  %v290 = vld [vmem:[%s3 + $0x2c4] sm:$0xf]
  %v291 = vld [vmem:[%s3 + $0x2cc] sm:$0xf]
  %v292 = vld [vmem:[%s3 + $0x2d4] sm:$0xf]
  %v293 = vld [vmem:[%s3 + $0x2dc] sm:$0xf]
  %v294 = vld [vmem:[%s3 + $0x2e4] sm:$0xf]
  %v295 = vld [vmem:[%s3 + $0x2ec] sm:$0xf]
  %v296 = vld [vmem:[%s3 + $0x2f4] sm:$0xf]
  %v297 = vld [vmem:[%s3 + $0x2fc] sm:$0xf]
  %v298 = vld [vmem:[%s3 + $0x304] sm:$0xf]
  %v299 = vld [vmem:[%s3 + $0x30c] sm:$0xf]
  %v300 = vld [vmem:[%s5] sm:$0x1]
  %v301 = vlaneseq
  %v302 = vshrl.u32 %v301, 7
  %v303 = vsub.s32 0, %v302
  %v304 = vrot.slane %v300, %v303
  %v403 = vunpack.c.l.b16 %v104
  %v404 = vunpack.c.l.b16 %v105
  %v405 = vunpack.c.l.b16 %v106
  %v406 = vunpack.c.l.b16 %v107
  %v407 = vunpack.c.l.b16 %v108
  %v408 = vunpack.c.l.b16 %v109
  %v409 = vunpack.c.l.b16 %v110
  %v410 = vunpack.c.l.b16 %v111
  %v411 = vunpack.c.l.b16 %v112
  %v412 = vunpack.c.l.b16 %v113
  %v413 = vunpack.c.l.b16 %v114
  %v414 = vunpack.c.l.b16 %v115
  %v415 = vunpack.c.l.b16 %v116
  %v416 = vunpack.c.l.b16 %v117
  %v417 = vunpack.c.l.b16 %v118
  %v418 = vunpack.c.l.b16 %v119
  %v419 = vunpack.c.l.b16 %v120
  %v420 = vunpack.c.l.b16 %v121
  %v421 = vunpack.c.l.b16 %v122
  %v422 = vunpack.c.l.b16 %v123
  %v423 = vunpack.c.l.b16 %v124
  %v424 = vunpack.c.l.b16 %v125
  %v425 = vunpack.c.l.b16 %v126
  %v426 = vunpack.c.l.b16 %v127
  %v427 = vunpack.c.l.b16 %v128
  %v428 = vunpack.c.l.b16 %v129
  %v429 = vunpack.c.l.b16 %v130
  %v430 = vunpack.c.l.b16 %v131
  %v431 = vunpack.c.l.b16 %v132
  %v432 = vunpack.c.l.b16 %v133
  %v433 = vunpack.c.l.b16 %v134
  %v434 = vunpack.c.l.b16 %v135
  %v435 = vunpack.c.l.b16 %v136
  %v436 = vunpack.c.l.b16 %v137
  %v437 = vunpack.c.l.b16 %v138
  %v438 = vunpack.c.l.b16 %v139
  %v439 = vunpack.c.l.b16 %v140
  %v440 = vunpack.c.l.b16 %v141
  %v441 = vunpack.c.l.b16 %v142
  %v442 = vunpack.c.l.b16 %v143
  %v443 = vunpack.c.l.b16 %v144
  %v444 = vunpack.c.l.b16 %v145
  %v445 = vunpack.c.l.b16 %v146
  %v446 = vunpack.c.l.b16 %v147
  %v447 = vunpack.c.l.b16 %v148
  %v448 = vunpack.c.l.b16 %v149
  %v449 = vunpack.c.l.b16 %v150
  %v450 = vunpack.c.l.b16 %v151
  %v451 = vunpack.c.l.b16 %v152
  %v452 = vunpack.c.l.b16 %v153
  %v453 = vunpack.c.l.b16 %v154
  %v454 = vunpack.c.l.b16 %v155
  %v455 = vunpack.c.l.b16 %v156
  %v456 = vunpack.c.l.b16 %v157
  %v457 = vunpack.c.l.b16 %v158
  %v458 = vunpack.c.l.b16 %v159
  %v459 = vunpack.c.l.b16 %v160
  %v460 = vunpack.c.l.b16 %v161
  %v461 = vunpack.c.l.b16 %v162
  %v462 = vunpack.c.l.b16 %v163
  %v463 = vunpack.c.l.b16 %v164
  %v464 = vunpack.c.l.b16 %v165
  %v465 = vunpack.c.l.b16 %v166
  %v466 = vunpack.c.l.b16 %v167
  %v467 = vunpack.c.l.b16 %v168
  %v468 = vunpack.c.l.b16 %v169
  %v469 = vunpack.c.l.b16 %v170
  %v470 = vunpack.c.l.b16 %v171
  %v471 = vunpack.c.l.b16 %v172
  %v472 = vunpack.c.l.b16 %v173
  %v473 = vunpack.c.l.b16 %v174
  %v474 = vunpack.c.l.b16 %v175
  %v475 = vunpack.c.l.b16 %v176
  %v476 = vunpack.c.l.b16 %v177
  %v477 = vunpack.c.l.b16 %v178
  %v478 = vunpack.c.l.b16 %v179
  %v479 = vunpack.c.l.b16 %v180
  %v480 = vunpack.c.l.b16 %v181
  %v481 = vunpack.c.l.b16 %v182
  %v482 = vunpack.c.l.b16 %v183
  %v483 = vunpack.c.l.b16 %v184
  %v484 = vunpack.c.l.b16 %v185
  %v485 = vunpack.c.l.b16 %v186
  %v486 = vunpack.c.l.b16 %v187
  %v487 = vunpack.c.l.b16 %v188
  %v488 = vunpack.c.l.b16 %v189
  %v489 = vunpack.c.l.b16 %v190
  %v490 = vunpack.c.l.b16 %v191
  %v491 = vunpack.c.l.b16 %v192
  %v492 = vunpack.c.l.b16 %v193
  %v493 = vunpack.c.l.b16 %v194
  %v494 = vunpack.c.l.b16 %v195
  %v495 = vunpack.c.l.b16 %v196
  %v496 = vunpack.c.l.b16 %v197
  %v497 = vunpack.c.l.b16 %v198
  %v498 = vunpack.c.l.b16 %v199
  %v499 = vunpack.c.l.b16 %v200
  %v500 = vunpack.c.l.b16 %v201
  %v501 = vpack.c.b16 %v404, %v403
  %v502 = vpack.c.b16 %v406, %v405
  %v503 = vpack.c.b16 %v408, %v407
  %v504 = vpack.c.b16 %v410, %v409
  %v505 = vpack.c.b16 %v412, %v411
  %v506 = vpack.c.b16 %v414, %v413
  %v507 = vpack.c.b16 %v416, %v415
  %v508 = vpack.c.b16 %v418, %v417
  %v509 = vpack.c.b16 %v420, %v419
  %v510 = vpack.c.b16 %v422, %v421
  %v511 = vpack.c.b16 %v424, %v423
  %v512 = vpack.c.b16 %v426, %v425
  %v513 = vpack.c.b16 %v428, %v427
  %v514 = vpack.c.b16 %v430, %v429
  %v515 = vpack.c.b16 %v432, %v431
  %v516 = vpack.c.b16 %v434, %v433
  %v517 = vpack.c.b16 %v436, %v435
  %v518 = vpack.c.b16 %v438, %v437
  %v519 = vpack.c.b16 %v440, %v439
  %v520 = vpack.c.b16 %v442, %v441
  %v521 = vpack.c.b16 %v444, %v443
  %v522 = vpack.c.b16 %v446, %v445
  %v523 = vpack.c.b16 %v448, %v447
  %v524 = vpack.c.b16 %v450, %v449
  %v525 = vpack.c.b16 %v452, %v451
  %v526 = vpack.c.b16 %v454, %v453
  %v527 = vpack.c.b16 %v456, %v455
  %v528 = vpack.c.b16 %v458, %v457
  %v529 = vpack.c.b16 %v460, %v459
  %v530 = vpack.c.b16 %v462, %v461
  %v531 = vpack.c.b16 %v464, %v463
  %v532 = vpack.c.b16 %v466, %v465
  %v533 = vpack.c.b16 %v468, %v467
  %v534 = vpack.c.b16 %v470, %v469
  %v535 = vpack.c.b16 %v472, %v471
  %v536 = vpack.c.b16 %v474, %v473
  %v537 = vpack.c.b16 %v476, %v475
  %v538 = vpack.c.b16 %v478, %v477
  %v539 = vpack.c.b16 %v480, %v479
  %v540 = vpack.c.b16 %v482, %v481
  %v541 = vpack.c.b16 %v484, %v483
  %v542 = vpack.c.b16 %v486, %v485
  %v543 = vpack.c.b16 %v488, %v487
  %v544 = vpack.c.b16 %v490, %v489
  %v545 = vpack.c.b16 %v492, %v491
  %v546 = vpack.c.b16 %v494, %v493
  %v547 = vpack.c.b16 %v496, %v495
  %v548 = vpack.c.b16 %v498, %v497
  %v549 = vpack.c.b16 %v500, %v499
  %vm599 = vcmask 130048
  %v601 = vsel %vm599, %v82, 0
  %603 = vmatprep.subr.bf16.mxu0 0
  %604 = vmatpush1.bf16.msra.mxu0 %v501
  %605 = vmatprep.subr.bf16.mxu0 0
  %606 = vmatpush1.bf16.msra.mxu0 %v502
  %607 = vmatprep.subr.bf16.mxu0 0
  %608 = vmatpush1.bf16.msra.mxu0 %v503
  %609 = vmatprep.subr.bf16.mxu0 0
  %610 = vmatpush1.bf16.msra.mxu0 %v504
  %611 = vmatprep.subr.bf16.mxu0 0
  %612 = vmatpush1.bf16.msra.mxu0 %v505
  %613 = vmatprep.subr.bf16.mxu0 0
  %614 = vmatpush1.bf16.msra.mxu0 %v506
  %615 = vmatprep.subr.bf16.mxu0 0
  %616 = vmatpush1.bf16.msra.mxu0 %v507
  %617 = vmatprep.subr.bf16.mxu0 0
  %618 = vmatpush1.bf16.msra.mxu0 %v508
  %619 = vmatprep.subr.bf16.mxu0 0
  %620 = vmatpush1.bf16.msra.mxu0 %v509
  %621 = vmatprep.subr.bf16.mxu0 0
  %622 = vmatpush1.bf16.msra.mxu0 %v510
  %623 = vmatprep.subr.bf16.mxu0 0
  %624 = vmatpush1.bf16.msra.mxu0 %v511
  %625 = vmatprep.subr.bf16.mxu0 0
  %626 = vmatpush1.bf16.msra.mxu0 %v512
  %627 = vmatprep.subr.bf16.mxu0 0
  %628 = vmatpush1.bf16.msra.mxu0 %v513
  %629 = vmatprep.subr.bf16.mxu0 0
  %630 = vmatpush1.bf16.msra.mxu0 %v514
  %631 = vmatprep.subr.bf16.mxu0 0
  %632 = vmatpush1.bf16.msra.mxu0 %v515
  %633 = vmatprep.subr.bf16.mxu0 0
  %634 = vmatpush1.bf16.msra.mxu0 %v516
  %635 = vmatprep.mubr.bf16.mxu0 %v77
  %636 = vmatmul.mubr.bf16.gmra.mrb[0].mxu0 %v76
  %v637 = vpop.f32.mrb[0].mxu0
  %v638 = vadd.f32 %v304, %v637
  %v639 = vpop.f32.mrb[0].mxu0
  %v640 = vpop.f32.mrb[0].mxu0
  %v641 = vadd.f32 %v304, %v640
  %v642 = vpop.f32.mrb[0].mxu0
  %643 = vdwg.mxu0
  %644 = vmatprep.subr.bf16.mxu0 0
  %645 = vmatpush1.bf16.msra.mxu0 %v517
  %646 = vmatprep.subr.bf16.mxu0 0
  %647 = vmatpush1.bf16.msra.mxu0 %v518
  %648 = vmatprep.subr.bf16.mxu0 0
  %649 = vmatpush1.bf16.msra.mxu0 %v519
  %650 = vmatprep.subr.bf16.mxu0 0
  %651 = vmatpush1.bf16.msra.mxu0 %v520
  %652 = vmatprep.subr.bf16.mxu0 0
  %653 = vmatpush1.bf16.msra.mxu0 %v521
  %654 = vmatprep.subr.bf16.mxu0 0
  %655 = vmatpush1.bf16.msra.mxu0 %v522
  %656 = vmatprep.subr.bf16.mxu0 0
  %657 = vmatpush1.bf16.msra.mxu0 %v523
  %658 = vmatprep.subr.bf16.mxu0 0
  %659 = vmatpush1.bf16.msra.mxu0 %v524
  %660 = vmatprep.subr.bf16.mxu0 0
  %661 = vmatpush1.bf16.msra.mxu0 %v525
  %662 = vmatprep.subr.bf16.mxu0 0
  %663 = vmatpush1.bf16.msra.mxu0 %v526
  %664 = vmatprep.subr.bf16.mxu0 0
  %665 = vmatpush1.bf16.msra.mxu0 %v527
  %666 = vmatprep.subr.bf16.mxu0 0
  %667 = vmatpush1.bf16.msra.mxu0 %v528
  %668 = vmatprep.subr.bf16.mxu0 0
  %669 = vmatpush1.bf16.msra.mxu0 %v529
  %670 = vmatprep.subr.bf16.mxu0 0
  %671 = vmatpush1.bf16.msra.mxu0 %v530
  %672 = vmatprep.subr.bf16.mxu0 0
  %673 = vmatpush1.bf16.msra.mxu0 %v531
  %674 = vmatprep.subr.bf16.mxu0 0
  %675 = vmatpush1.bf16.msra.mxu0 %v532
  %676 = vmatprep.mubr.bf16.mxu0 %v79
  %677 = vmatmul.mubr.bf16.gmra.mrb[0].mxu0 %v78
  %v678 = vpop.f32.mrb[0].mxu0
  %v679 = vadd.f32 %v638, %v678
  %v680 = vpop.f32.mrb[0].mxu0
  %v681 = vpop.f32.mrb[0].mxu0
  %v682 = vadd.f32 %v641, %v681
  %v683 = vpop.f32.mrb[0].mxu0
  %684 = vdwg.mxu0
  %685 = vmatprep.subr.bf16.mxu0 0
  %686 = vmatpush1.bf16.msra.mxu0 %v533
  %687 = vmatprep.subr.bf16.mxu0 0
  %688 = vmatpush1.bf16.msra.mxu0 %v534
  %689 = vmatprep.subr.bf16.mxu0 0
  %690 = vmatpush1.bf16.msra.mxu0 %v535
  %691 = vmatprep.subr.bf16.mxu0 0
  %692 = vmatpush1.bf16.msra.mxu0 %v536
  %693 = vmatprep.subr.bf16.mxu0 0
  %694 = vmatpush1.bf16.msra.mxu0 %v537
  %695 = vmatprep.subr.bf16.mxu0 0
  %696 = vmatpush1.bf16.msra.mxu0 %v538
  %697 = vmatprep.subr.bf16.mxu0 0
  %698 = vmatpush1.bf16.msra.mxu0 %v539
  %699 = vmatprep.subr.bf16.mxu0 0
  %700 = vmatpush1.bf16.msra.mxu0 %v540
  %701 = vmatprep.subr.bf16.mxu0 0
  %702 = vmatpush1.bf16.msra.mxu0 %v541
  %703 = vmatprep.subr.bf16.mxu0 0
  %704 = vmatpush1.bf16.msra.mxu0 %v542
  %705 = vmatprep.subr.bf16.mxu0 0
  %706 = vmatpush1.bf16.msra.mxu0 %v543
  %707 = vmatprep.subr.bf16.mxu0 0
  %708 = vmatpush1.bf16.msra.mxu0 %v544
  %709 = vmatprep.subr.bf16.mxu0 0
  %710 = vmatpush1.bf16.msra.mxu0 %v545
  %711 = vmatprep.subr.bf16.mxu0 0
  %712 = vmatpush1.bf16.msra.mxu0 %v546
  %713 = vmatprep.subr.bf16.mxu0 0
  %714 = vmatpush1.bf16.msra.mxu0 %v547
  %715 = vmatprep.subr.bf16.mxu0 0
  %716 = vmatpush1.bf16.msra.mxu0 %v548
  %717 = vmatprep.mubr.bf16.mxu0 %v81
  %718 = vmatmul.mubr.bf16.gmra.mrb[0].mxu0 %v80
  %v719 = vpop.f32.mrb[0].mxu0
  %v720 = vadd.f32 %v679, %v719
  %v721 = vpop.f32.mrb[0].mxu0
  %v722 = vpop.f32.mrb[0].mxu0
  %v723 = vadd.f32 %v682, %v722
  %v724 = vpop.f32.mrb[0].mxu0
  %725 = vdwg.mxu0
  %726 = vmatprep.subr.bf16.mxu0 0
  %727 = vmatpush1.bf16.msra.mxu0 %v549
  %728 = vmatprep.subr.bf16.mxu0 0
  %729 = vmatpush1.bf16.msra.mxu0 0
  %730 = vmatprep.subr.bf16.mxu0 0
  %731 = vmatpush1.bf16.msra.mxu0 0
  %732 = vmatprep.subr.bf16.mxu0 0
  %733 = vmatpush1.bf16.msra.mxu0 0
  %734 = vmatprep.subr.bf16.mxu0 0
  %735 = vmatpush1.bf16.msra.mxu0 0
  %736 = vmatprep.subr.bf16.mxu0 0
  %737 = vmatpush1.bf16.msra.mxu0 0
  %738 = vmatprep.subr.bf16.mxu0 0
  %739 = vmatpush1.bf16.msra.mxu0 0
  %740 = vmatprep.subr.bf16.mxu0 0
  %741 = vmatpush1.bf16.msra.mxu0 0
  %742 = vmatprep.subr.bf16.mxu0 0
  %743 = vmatpush1.bf16.msra.mxu0 0
  %744 = vmatprep.subr.bf16.mxu0 0
  %745 = vmatpush1.bf16.msra.mxu0 0
  %746 = vmatprep.subr.bf16.mxu0 0
  %747 = vmatpush1.bf16.msra.mxu0 0
  %748 = vmatprep.subr.bf16.mxu0 0
  %749 = vmatpush1.bf16.msra.mxu0 0
  %750 = vmatprep.subr.bf16.mxu0 0
  %751 = vmatpush1.bf16.msra.mxu0 0
  %752 = vmatprep.subr.bf16.mxu0 0
  %753 = vmatpush1.bf16.msra.mxu0 0
  %754 = vmatprep.subr.bf16.mxu0 0
  %755 = vmatpush1.bf16.msra.mxu0 0
  %756 = vmatprep.subr.bf16.mxu0 0
  %757 = vmatpush1.bf16.msra.mxu0 0
  %758 = vmatprep.mubr.bf16.mxu0 0
  %759 = vmatmul.mubr.bf16.gmra.mrb[0].mxu0 %v601
  %v760 = vpop.f32.mrb[0].mxu0
  %v761 = vadd.f32 %v720, %v760
  %v762 = vpop.f32.mrb[0].mxu0
  %v763 = vpop.f32.mrb[0].mxu0
  %v764 = vadd.f32 %v723, %v763
  %v765 = vpop.f32.mrb[0].mxu0
  %766 = vdwg.mxu0
  %v767 = vld [vmem:[%s5 + $0x1] sm:$0x1]
  %v768 = vlaneseq
  %v769 = vshrl.u32 %v768, 7
  %v770 = vsub.s32 0, %v769
  %v771 = vrot.slane %v767, %v770
  %v870 = vunpack.c.l.b16 %v202
  %v871 = vunpack.c.l.b16 %v203
  %v872 = vunpack.c.l.b16 %v204
  %v873 = vunpack.c.l.b16 %v205
  %v874 = vunpack.c.l.b16 %v206
  %v875 = vunpack.c.l.b16 %v207
  %v876 = vunpack.c.l.b16 %v208
  %v877 = vunpack.c.l.b16 %v209
  %v878 = vunpack.c.l.b16 %v210
  %v879 = vunpack.c.l.b16 %v211
  %v880 = vunpack.c.l.b16 %v212
  %v881 = vunpack.c.l.b16 %v213
  %v882 = vunpack.c.l.b16 %v214
  %v883 = vunpack.c.l.b16 %v215
  %v884 = vunpack.c.l.b16 %v216
  %v885 = vunpack.c.l.b16 %v217
  %v886 = vunpack.c.l.b16 %v218
  %v887 = vunpack.c.l.b16 %v219
  %v888 = vunpack.c.l.b16 %v220
  %v889 = vunpack.c.l.b16 %v221
  %v890 = vunpack.c.l.b16 %v222
  %v891 = vunpack.c.l.b16 %v223
  %v892 = vunpack.c.l.b16 %v224
  %v893 = vunpack.c.l.b16 %v225
  %v894 = vunpack.c.l.b16 %v226
  %v895 = vunpack.c.l.b16 %v227
  %v896 = vunpack.c.l.b16 %v228
  %v897 = vunpack.c.l.b16 %v229
  %v898 = vunpack.c.l.b16 %v230
  %v899 = vunpack.c.l.b16 %v231
  %v900 = vunpack.c.l.b16 %v232
  %v901 = vunpack.c.l.b16 %v233
  %v902 = vunpack.c.l.b16 %v234
  %v903 = vunpack.c.l.b16 %v235
  %v904 = vunpack.c.l.b16 %v236
  %v905 = vunpack.c.l.b16 %v237
  %v906 = vunpack.c.l.b16 %v238
  %v907 = vunpack.c.l.b16 %v239
  %v908 = vunpack.c.l.b16 %v240
  %v909 = vunpack.c.l.b16 %v241
  %v910 = vunpack.c.l.b16 %v242
  %v911 = vunpack.c.l.b16 %v243
  %v912 = vunpack.c.l.b16 %v244
  %v913 = vunpack.c.l.b16 %v245
  %v914 = vunpack.c.l.b16 %v246
  %v915 = vunpack.c.l.b16 %v247
  %v916 = vunpack.c.l.b16 %v248
  %v917 = vunpack.c.l.b16 %v249
  %v918 = vunpack.c.l.b16 %v250
  %v919 = vunpack.c.l.b16 %v251
  %v920 = vunpack.c.l.b16 %v252
  %v921 = vunpack.c.l.b16 %v253
  %v922 = vunpack.c.l.b16 %v254
  %v923 = vunpack.c.l.b16 %v255
  %v924 = vunpack.c.l.b16 %v256
  %v925 = vunpack.c.l.b16 %v257
  %v926 = vunpack.c.l.b16 %v258
  %v927 = vunpack.c.l.b16 %v259
  %v928 = vunpack.c.l.b16 %v260
  %v929 = vunpack.c.l.b16 %v261
  %v930 = vunpack.c.l.b16 %v262
  %v931 = vunpack.c.l.b16 %v263
  %v932 = vunpack.c.l.b16 %v264
  %v933 = vunpack.c.l.b16 %v265
  %v934 = vunpack.c.l.b16 %v266
  %v935 = vunpack.c.l.b16 %v267
  %v936 = vunpack.c.l.b16 %v268
  %v937 = vunpack.c.l.b16 %v269
  %v938 = vunpack.c.l.b16 %v270
  %v939 = vunpack.c.l.b16 %v271
  %v940 = vunpack.c.l.b16 %v272
  %v941 = vunpack.c.l.b16 %v273
  %v942 = vunpack.c.l.b16 %v274
  %v943 = vunpack.c.l.b16 %v275
  %v944 = vunpack.c.l.b16 %v276
  %v945 = vunpack.c.l.b16 %v277
  %v946 = vunpack.c.l.b16 %v278
  %v947 = vunpack.c.l.b16 %v279
  %v948 = vunpack.c.l.b16 %v280
  %v949 = vunpack.c.l.b16 %v281
  %v950 = vunpack.c.l.b16 %v282
  %v951 = vunpack.c.l.b16 %v283
  %v952 = vunpack.c.l.b16 %v284
  %v953 = vunpack.c.l.b16 %v285
  %v954 = vunpack.c.l.b16 %v286
  %v955 = vunpack.c.l.b16 %v287
  %v956 = vunpack.c.l.b16 %v288
  %v957 = vunpack.c.l.b16 %v289
  %v958 = vunpack.c.l.b16 %v290
  %v959 = vunpack.c.l.b16 %v291
  %v960 = vunpack.c.l.b16 %v292
  %v961 = vunpack.c.l.b16 %v293
  %v962 = vunpack.c.l.b16 %v294
  %v963 = vunpack.c.l.b16 %v295
  %v964 = vunpack.c.l.b16 %v296
  %v965 = vunpack.c.l.b16 %v297
  %v966 = vunpack.c.l.b16 %v298
  %v967 = vunpack.c.l.b16 %v299
  %v968 = vpack.c.b16 %v871, %v870
  %v969 = vpack.c.b16 %v873, %v872
  %v970 = vpack.c.b16 %v875, %v874
  %v971 = vpack.c.b16 %v877, %v876
  %v972 = vpack.c.b16 %v879, %v878
  %v973 = vpack.c.b16 %v881, %v880
  %v974 = vpack.c.b16 %v883, %v882
  %v975 = vpack.c.b16 %v885, %v884
  %v976 = vpack.c.b16 %v887, %v886
  %v977 = vpack.c.b16 %v889, %v888
  %v978 = vpack.c.b16 %v891, %v890
  %v979 = vpack.c.b16 %v893, %v892
  %v980 = vpack.c.b16 %v895, %v894
  %v981 = vpack.c.b16 %v897, %v896
  %v982 = vpack.c.b16 %v899, %v898
  %v983 = vpack.c.b16 %v901, %v900
  %v984 = vpack.c.b16 %v903, %v902
  %v985 = vpack.c.b16 %v905, %v904
  %v986 = vpack.c.b16 %v907, %v906
  %v987 = vpack.c.b16 %v909, %v908
  %v988 = vpack.c.b16 %v911, %v910
  %v989 = vpack.c.b16 %v913, %v912
  %v990 = vpack.c.b16 %v915, %v914
  %v991 = vpack.c.b16 %v917, %v916
  %v992 = vpack.c.b16 %v919, %v918
  %v993 = vpack.c.b16 %v921, %v920
  %v994 = vpack.c.b16 %v923, %v922
  %v995 = vpack.c.b16 %v925, %v924
  %v996 = vpack.c.b16 %v927, %v926
  %v997 = vpack.c.b16 %v929, %v928
  %v998 = vpack.c.b16 %v931, %v930
  %v999 = vpack.c.b16 %v933, %v932
  %v1000 = vpack.c.b16 %v935, %v934
  %v1001 = vpack.c.b16 %v937, %v936
  %v1002 = vpack.c.b16 %v939, %v938
  %v1003 = vpack.c.b16 %v941, %v940
  %v1004 = vpack.c.b16 %v943, %v942
  %v1005 = vpack.c.b16 %v945, %v944
  %v1006 = vpack.c.b16 %v947, %v946
  %v1007 = vpack.c.b16 %v949, %v948
  %v1008 = vpack.c.b16 %v951, %v950
  %v1009 = vpack.c.b16 %v953, %v952
  %v1010 = vpack.c.b16 %v955, %v954
  %v1011 = vpack.c.b16 %v957, %v956
  %v1012 = vpack.c.b16 %v959, %v958
  %v1013 = vpack.c.b16 %v961, %v960
  %v1014 = vpack.c.b16 %v963, %v962
  %v1015 = vpack.c.b16 %v965, %v964
  %v1016 = vpack.c.b16 %v967, %v966
  %v1067 = vsel %vm599, %v103, 0
  %1069 = vmatprep.subr.bf16.mxu0 0
  %1070 = vmatpush1.bf16.msra.mxu0 %v968
  %1071 = vmatprep.subr.bf16.mxu0 0
  %1072 = vmatpush1.bf16.msra.mxu0 %v969
  %1073 = vmatprep.subr.bf16.mxu0 0
  %1074 = vmatpush1.bf16.msra.mxu0 %v970
  %1075 = vmatprep.subr.bf16.mxu0 0
  %1076 = vmatpush1.bf16.msra.mxu0 %v971
  %1077 = vmatprep.subr.bf16.mxu0 0
  %1078 = vmatpush1.bf16.msra.mxu0 %v972
  %1079 = vmatprep.subr.bf16.mxu0 0
  %1080 = vmatpush1.bf16.msra.mxu0 %v973
  %1081 = vmatprep.subr.bf16.mxu0 0
  %1082 = vmatpush1.bf16.msra.mxu0 %v974
  %1083 = vmatprep.subr.bf16.mxu0 0
  %1084 = vmatpush1.bf16.msra.mxu0 %v975
  %1085 = vmatprep.subr.bf16.mxu0 0
  %1086 = vmatpush1.bf16.msra.mxu0 %v976
  %1087 = vmatprep.subr.bf16.mxu0 0
  %1088 = vmatpush1.bf16.msra.mxu0 %v977
  %1089 = vmatprep.subr.bf16.mxu0 0
  %1090 = vmatpush1.bf16.msra.mxu0 %v978
  %1091 = vmatprep.subr.bf16.mxu0 0
  %1092 = vmatpush1.bf16.msra.mxu0 %v979
  %1093 = vmatprep.subr.bf16.mxu0 0
  %1094 = vmatpush1.bf16.msra.mxu0 %v980
  %1095 = vmatprep.subr.bf16.mxu0 0
  %1096 = vmatpush1.bf16.msra.mxu0 %v981
  %1097 = vmatprep.subr.bf16.mxu0 0
  %1098 = vmatpush1.bf16.msra.mxu0 %v982
  %1099 = vmatprep.subr.bf16.mxu0 0
  %1100 = vmatpush1.bf16.msra.mxu0 %v983
  %1101 = vmatprep.mubr.bf16.mxu0 %v98
  %1102 = vmatmul.mubr.bf16.gmra.mrb[0].mxu0 %v97
  %v1103 = vpop.f32.mrb[0].mxu0
  %v1104 = vadd.f32 %v771, %v1103
  %v1105 = vpop.f32.mrb[0].mxu0
  %v1106 = vpop.f32.mrb[0].mxu0
  %v1107 = vadd.f32 %v771, %v1106
  %v1108 = vpop.f32.mrb[0].mxu0
  %1109 = vdwg.mxu0
  %1110 = vmatprep.subr.bf16.mxu0 0
  %1111 = vmatpush1.bf16.msra.mxu0 %v984
  %1112 = vmatprep.subr.bf16.mxu0 0
  %1113 = vmatpush1.bf16.msra.mxu0 %v985
  %1114 = vmatprep.subr.bf16.mxu0 0
  %1115 = vmatpush1.bf16.msra.mxu0 %v986
  %1116 = vmatprep.subr.bf16.mxu0 0
  %1117 = vmatpush1.bf16.msra.mxu0 %v987
  %1118 = vmatprep.subr.bf16.mxu0 0
  %1119 = vmatpush1.bf16.msra.mxu0 %v988
  %1120 = vmatprep.subr.bf16.mxu0 0
  %1121 = vmatpush1.bf16.msra.mxu0 %v989
  %1122 = vmatprep.subr.bf16.mxu0 0
  %1123 = vmatpush1.bf16.msra.mxu0 %v990
  %1124 = vmatprep.subr.bf16.mxu0 0
  %1125 = vmatpush1.bf16.msra.mxu0 %v991
  %1126 = vmatprep.subr.bf16.mxu0 0
  %1127 = vmatpush1.bf16.msra.mxu0 %v992
  %1128 = vmatprep.subr.bf16.mxu0 0
  %1129 = vmatpush1.bf16.msra.mxu0 %v993
  %1130 = vmatprep.subr.bf16.mxu0 0
  %1131 = vmatpush1.bf16.msra.mxu0 %v994
  %1132 = vmatprep.subr.bf16.mxu0 0
  %1133 = vmatpush1.bf16.msra.mxu0 %v995
  %1134 = vmatprep.subr.bf16.mxu0 0
  %1135 = vmatpush1.bf16.msra.mxu0 %v996
  %1136 = vmatprep.subr.bf16.mxu0 0
  %1137 = vmatpush1.bf16.msra.mxu0 %v997
  %1138 = vmatprep.subr.bf16.mxu0 0
  %1139 = vmatpush1.bf16.msra.mxu0 %v998
  %1140 = vmatprep.subr.bf16.mxu0 0
  %1141 = vmatpush1.bf16.msra.mxu0 %v999
  %1142 = vmatprep.mubr.bf16.mxu0 %v100
  %1143 = vmatmul.mubr.bf16.gmra.mrb[0].mxu0 %v99
  %v1144 = vpop.f32.mrb[0].mxu0
  %v1145 = vadd.f32 %v1104, %v1144
  %v1146 = vpop.f32.mrb[0].mxu0
  %v1147 = vpop.f32.mrb[0].mxu0
  %v1148 = vadd.f32 %v1107, %v1147
  %v1149 = vpop.f32.mrb[0].mxu0
  %1150 = vdwg.mxu0
  %1151 = vmatprep.subr.bf16.mxu0 0
  %1152 = vmatpush1.bf16.msra.mxu0 %v1000
  %1153 = vmatprep.subr.bf16.mxu0 0
  %1154 = vmatpush1.bf16.msra.mxu0 %v1001
  %1155 = vmatprep.subr.bf16.mxu0 0
  %1156 = vmatpush1.bf16.msra.mxu0 %v1002
  %1157 = vmatprep.subr.bf16.mxu0 0
  %1158 = vmatpush1.bf16.msra.mxu0 %v1003
  %1159 = vmatprep.subr.bf16.mxu0 0
  %1160 = vmatpush1.bf16.msra.mxu0 %v1004
  %1161 = vmatprep.subr.bf16.mxu0 0
  %1162 = vmatpush1.bf16.msra.mxu0 %v1005
  %1163 = vmatprep.subr.bf16.mxu0 0
  %1164 = vmatpush1.bf16.msra.mxu0 %v1006
  %1165 = vmatprep.subr.bf16.mxu0 0
  %1166 = vmatpush1.bf16.msra.mxu0 %v1007
  %1167 = vmatprep.subr.bf16.mxu0 0
  %1168 = vmatpush1.bf16.msra.mxu0 %v1008
  %1169 = vmatprep.subr.bf16.mxu0 0
  %1170 = vmatpush1.bf16.msra.mxu0 %v1009
  %1171 = vmatprep.subr.bf16.mxu0 0
  %1172 = vmatpush1.bf16.msra.mxu0 %v1010
  %1173 = vmatprep.subr.bf16.mxu0 0
  %1174 = vmatpush1.bf16.msra.mxu0 %v1011
  %1175 = vmatprep.subr.bf16.mxu0 0
  %1176 = vmatpush1.bf16.msra.mxu0 %v1012
  %1177 = vmatprep.subr.bf16.mxu0 0
  %1178 = vmatpush1.bf16.msra.mxu0 %v1013
  %1179 = vmatprep.subr.bf16.mxu0 0
  %1180 = vmatpush1.bf16.msra.mxu0 %v1014
  %1181 = vmatprep.subr.bf16.mxu0 0
  %1182 = vmatpush1.bf16.msra.mxu0 %v1015
  %1183 = vmatprep.mubr.bf16.mxu0 %v102
  %1184 = vmatmul.mubr.bf16.gmra.mrb[0].mxu0 %v101
  %v1185 = vpop.f32.mrb[0].mxu0
  %v1186 = vadd.f32 %v1145, %v1185
  %v1187 = vpop.f32.mrb[0].mxu0
  %v1188 = vpop.f32.mrb[0].mxu0
  %v1189 = vadd.f32 %v1148, %v1188
  %v1190 = vpop.f32.mrb[0].mxu0
  %1191 = vdwg.mxu0
  %1192 = vmatprep.subr.bf16.mxu0 0
  %1193 = vmatpush1.bf16.msra.mxu0 %v1016
  %1194 = vmatprep.subr.bf16.mxu0 0
  %1195 = vmatpush1.bf16.msra.mxu0 0
  %1196 = vmatprep.subr.bf16.mxu0 0
  %1197 = vmatpush1.bf16.msra.mxu0 0
  %1198 = vmatprep.subr.bf16.mxu0 0
  %1199 = vmatpush1.bf16.msra.mxu0 0
  %1200 = vmatprep.subr.bf16.mxu0 0
  %1201 = vmatpush1.bf16.msra.mxu0 0
  %1202 = vmatprep.subr.bf16.mxu0 0
  %1203 = vmatpush1.bf16.msra.mxu0 0
  %1204 = vmatprep.subr.bf16.mxu0 0
  %1205 = vmatpush1.bf16.msra.mxu0 0
  %1206 = vmatprep.subr.bf16.mxu0 0
  %1207 = vmatpush1.bf16.msra.mxu0 0
  %1208 = vmatprep.subr.bf16.mxu0 0
  %1209 = vmatpush1.bf16.msra.mxu0 0
  %1210 = vmatprep.subr.bf16.mxu0 0
  %1211 = vmatpush1.bf16.msra.mxu0 0
  %1212 = vmatprep.subr.bf16.mxu0 0
  %1213 = vmatpush1.bf16.msra.mxu0 0
  %1214 = vmatprep.subr.bf16.mxu0 0
  %1215 = vmatpush1.bf16.msra.mxu0 0
  %1216 = vmatprep.subr.bf16.mxu0 0
  %1217 = vmatpush1.bf16.msra.mxu0 0
  %1218 = vmatprep.subr.bf16.mxu0 0
  %1219 = vmatpush1.bf16.msra.mxu0 0
  %1220 = vmatprep.subr.bf16.mxu0 0
  %1221 = vmatpush1.bf16.msra.mxu0 0
  %1222 = vmatprep.subr.bf16.mxu0 0
  %1223 = vmatpush1.bf16.msra.mxu0 0
  %1224 = vmatprep.mubr.bf16.mxu0 0
  %1225 = vmatmul.mubr.bf16.gmra.mrb[0].mxu0 %v1067
  %v1226 = vpop.f32.mrb[0].mxu0
  %v1227 = vadd.f32 %v1186, %v1226
  %v1228 = vpop.f32.mrb[0].mxu0
  %v1229 = vpop.f32.mrb[0].mxu0
  %v1230 = vadd.f32 %v1189, %v1229
  %v1231 = vpop.f32.mrb[0].mxu0
  %1232 = vdwg.mxu0
  %v1233 = vmul.f32 %v1227, %v66
  %v1234 = vmul.f32 %v1230, %v71
  %v1235 = vadd.f32 %v761, %v1233
  %v1236 = vadd.f32 %v764, %v1234
  %v1237 = vmax.f32 %v1235, 0.0
  %v1238 = vmax.f32 %v1236, 0.0
  %v1239 = vpack.c.bf16 %v1238, %v1237
  %v1240 = vmul.f32 %v1237, %v67
  %v1241 = vmul.f32 %v1238, %v72
  %v1242 = vpack.c.bf16 %v1241, %v1240
  %v1243 = vld [vmem:[%s4] sm:$0xf]
  %v1244 = vld [vmem:[%s4 + $0x10] sm:$0xf]
  %v1245 = vld [vmem:[%s4 + $0x20] sm:$0xf]
  %v1246 = vld [vmem:[%s4 + $0x30] sm:$0xf]
  %v1247 = vld [vmem:[%s4 + $0x40] sm:$0xf]
  %v1248 = vld [vmem:[%s4 + $0x50] sm:$0xf]
  %v1249 = vld [vmem:[%s4 + $0x60] sm:$0xf]
  %v1250 = vld [vmem:[%s4 + $0x70] sm:$0xf]
  %v1251 = vld [vmem:[%s4 + $0x80] sm:$0xf]
  %v1252 = vld [vmem:[%s4 + $0x90] sm:$0xf]
  %v1253 = vld [vmem:[%s4 + $0xa0] sm:$0xf]
  %v1254 = vld [vmem:[%s4 + $0xb0] sm:$0xf]
  %v1255 = vld [vmem:[%s4 + $0xc0] sm:$0xf]
  %v1256 = vld [vmem:[%s4 + $0xd0] sm:$0xf]
  %v1257 = vld [vmem:[%s4 + $0xe0] sm:$0xf]
  %v1258 = vld [vmem:[%s4 + $0xf0] sm:$0xf]
  %v1259 = vld [vmem:[%s4 + $0x4] sm:$0xf]
  %v1260 = vld [vmem:[%s4 + $0x14] sm:$0xf]
  %v1261 = vld [vmem:[%s4 + $0x24] sm:$0xf]
  %v1262 = vld [vmem:[%s4 + $0x34] sm:$0xf]
  %v1263 = vld [vmem:[%s4 + $0x44] sm:$0xf]
  %v1264 = vld [vmem:[%s4 + $0x54] sm:$0xf]
  %v1265 = vld [vmem:[%s4 + $0x64] sm:$0xf]
  %v1266 = vld [vmem:[%s4 + $0x74] sm:$0xf]
  %v1267 = vld [vmem:[%s4 + $0x84] sm:$0xf]
  %v1268 = vld [vmem:[%s4 + $0x94] sm:$0xf]
  %v1269 = vld [vmem:[%s4 + $0xa4] sm:$0xf]
  %v1270 = vld [vmem:[%s4 + $0xb4] sm:$0xf]
  %v1271 = vld [vmem:[%s4 + $0xc4] sm:$0xf]
  %v1272 = vld [vmem:[%s4 + $0xd4] sm:$0xf]
  %v1273 = vld [vmem:[%s4 + $0xe4] sm:$0xf]
  %v1274 = vld [vmem:[%s4 + $0xf4] sm:$0xf]
  %v1275 = vld [vmem:[%s5 + $0x2] sm:$0x1]
  %v1276 = vlaneseq
  %v1277 = vshrl.u32 %v1276, 7
  %v1278 = vsub.s32 0, %v1277
  %v1279 = vrot.slane %v1275, %v1278
  %v1296 = vunpack.c.l.b16 %v1243
  %v1297 = vunpack.c.l.b16 %v1244
  %v1298 = vunpack.c.l.b16 %v1245
  %v1299 = vunpack.c.l.b16 %v1246
  %v1300 = vunpack.c.l.b16 %v1247
  %v1301 = vunpack.c.l.b16 %v1248
  %v1302 = vunpack.c.l.b16 %v1249
  %v1303 = vunpack.c.l.b16 %v1250
  %v1304 = vunpack.c.l.b16 %v1251
  %v1305 = vunpack.c.l.b16 %v1252
  %v1306 = vunpack.c.l.b16 %v1253
  %v1307 = vunpack.c.l.b16 %v1254
  %v1308 = vunpack.c.l.b16 %v1255
  %v1309 = vunpack.c.l.b16 %v1256
  %v1310 = vunpack.c.l.b16 %v1257
  %v1311 = vunpack.c.l.b16 %v1258
  %v1312 = vpack.c.b16 %v1297, %v1296
  %v1313 = vpack.c.b16 %v1299, %v1298
  %v1314 = vpack.c.b16 %v1301, %v1300
  %v1315 = vpack.c.b16 %v1303, %v1302
  %v1316 = vpack.c.b16 %v1305, %v1304
  %v1317 = vpack.c.b16 %v1307, %v1306
  %v1318 = vpack.c.b16 %v1309, %v1308
  %v1319 = vpack.c.b16 %v1311, %v1310
  %1328 = vmatprep.subr.bf16.mxu0 0
  %1329 = vmatpush1.bf16.msra.mxu0 %v1312
  %1330 = vmatprep.subr.bf16.mxu0 0
  %1331 = vmatpush1.bf16.msra.mxu0 %v1313
  %1332 = vmatprep.subr.bf16.mxu0 0
  %1333 = vmatpush1.bf16.msra.mxu0 %v1314
  %1334 = vmatprep.subr.bf16.mxu0 0
  %1335 = vmatpush1.bf16.msra.mxu0 %v1315
  %1336 = vmatprep.subr.bf16.mxu0 0
  %1337 = vmatpush1.bf16.msra.mxu0 %v1316
  %1338 = vmatprep.subr.bf16.mxu0 0
  %1339 = vmatpush1.bf16.msra.mxu0 %v1317
  %1340 = vmatprep.subr.bf16.mxu0 0
  %1341 = vmatpush1.bf16.msra.mxu0 %v1318
  %1342 = vmatprep.subr.bf16.mxu0 0
  %1343 = vmatpush1.bf16.msra.mxu0 %v1319
  %1344 = vmatprep.subr.bf16.mxu0 0
  %1345 = vmatpush1.bf16.msra.mxu0 0
  %1346 = vmatprep.subr.bf16.mxu0 0
  %1347 = vmatpush1.bf16.msra.mxu0 0
  %1348 = vmatprep.subr.bf16.mxu0 0
  %1349 = vmatpush1.bf16.msra.mxu0 0
  %1350 = vmatprep.subr.bf16.mxu0 0
  %1351 = vmatpush1.bf16.msra.mxu0 0
  %1352 = vmatprep.subr.bf16.mxu0 0
  %1353 = vmatpush1.bf16.msra.mxu0 0
  %1354 = vmatprep.subr.bf16.mxu0 0
  %1355 = vmatpush1.bf16.msra.mxu0 0
  %1356 = vmatprep.subr.bf16.mxu0 0
  %1357 = vmatpush1.bf16.msra.mxu0 0
  %1358 = vmatprep.subr.bf16.mxu0 0
  %1359 = vmatpush1.bf16.msra.mxu0 0
  %1360 = vmatprep.mubr.bf16.mxu0 0
  %1361 = vmatmul.mubr.bf16.gmra.mrb[0].mxu0 %v1239
  %v1362 = vpop.f32.mrb[0].mxu0
  %v1363 = vadd.f32 %v1279, %v1362
  %v1364 = vpop.f32.mrb[0].mxu0
  %v1365 = vpop.f32.mrb[0].mxu0
  %v1366 = vadd.f32 %v1279, %v1365
  %v1367 = vpop.f32.mrb[0].mxu0
  %1368 = vdwg.mxu0
  %v1369 = vld [vmem:[%s5 + $0x3] sm:$0x1]
  %v1370 = vlaneseq
  %v1371 = vshrl.u32 %v1370, 7
  %v1372 = vsub.s32 0, %v1371
  %v1373 = vrot.slane %v1369, %v1372
  %v1390 = vunpack.c.l.b16 %v1259
  %v1391 = vunpack.c.l.b16 %v1260
  %v1392 = vunpack.c.l.b16 %v1261
  %v1393 = vunpack.c.l.b16 %v1262
  %v1394 = vunpack.c.l.b16 %v1263
  %v1395 = vunpack.c.l.b16 %v1264
  %v1396 = vunpack.c.l.b16 %v1265
  %v1397 = vunpack.c.l.b16 %v1266
  %v1398 = vunpack.c.l.b16 %v1267
  %v1399 = vunpack.c.l.b16 %v1268
  %v1400 = vunpack.c.l.b16 %v1269
  %v1401 = vunpack.c.l.b16 %v1270
  %v1402 = vunpack.c.l.b16 %v1271
  %v1403 = vunpack.c.l.b16 %v1272
  %v1404 = vunpack.c.l.b16 %v1273
  %v1405 = vunpack.c.l.b16 %v1274
  %v1406 = vpack.c.b16 %v1391, %v1390
  %v1407 = vpack.c.b16 %v1393, %v1392
  %v1408 = vpack.c.b16 %v1395, %v1394
  %v1409 = vpack.c.b16 %v1397, %v1396
  %v1410 = vpack.c.b16 %v1399, %v1398
  %v1411 = vpack.c.b16 %v1401, %v1400
  %v1412 = vpack.c.b16 %v1403, %v1402
  %v1413 = vpack.c.b16 %v1405, %v1404
  %1422 = vmatprep.subr.bf16.mxu0 0
  %1423 = vmatpush1.bf16.msra.mxu0 %v1406
  %1424 = vmatprep.subr.bf16.mxu0 0
  %1425 = vmatpush1.bf16.msra.mxu0 %v1407
  %1426 = vmatprep.subr.bf16.mxu0 0
  %1427 = vmatpush1.bf16.msra.mxu0 %v1408
  %1428 = vmatprep.subr.bf16.mxu0 0
  %1429 = vmatpush1.bf16.msra.mxu0 %v1409
  %1430 = vmatprep.subr.bf16.mxu0 0
  %1431 = vmatpush1.bf16.msra.mxu0 %v1410
  %1432 = vmatprep.subr.bf16.mxu0 0
  %1433 = vmatpush1.bf16.msra.mxu0 %v1411
  %1434 = vmatprep.subr.bf16.mxu0 0
  %1435 = vmatpush1.bf16.msra.mxu0 %v1412
  %1436 = vmatprep.subr.bf16.mxu0 0
  %1437 = vmatpush1.bf16.msra.mxu0 %v1413
  %1438 = vmatprep.subr.bf16.mxu0 0
  %1439 = vmatpush1.bf16.msra.mxu0 0
  %1440 = vmatprep.subr.bf16.mxu0 0
  %1441 = vmatpush1.bf16.msra.mxu0 0
  %1442 = vmatprep.subr.bf16.mxu0 0
  %1443 = vmatpush1.bf16.msra.mxu0 0
  %1444 = vmatprep.subr.bf16.mxu0 0
  %1445 = vmatpush1.bf16.msra.mxu0 0
  %1446 = vmatprep.subr.bf16.mxu0 0
  %1447 = vmatpush1.bf16.msra.mxu0 0
  %1448 = vmatprep.subr.bf16.mxu0 0
  %1449 = vmatpush1.bf16.msra.mxu0 0
  %1450 = vmatprep.subr.bf16.mxu0 0
  %1451 = vmatpush1.bf16.msra.mxu0 0
  %1452 = vmatprep.subr.bf16.mxu0 0
  %1453 = vmatpush1.bf16.msra.mxu0 0
  %1454 = vmatprep.mubr.bf16.mxu0 0
  %1455 = vmatmul.mubr.bf16.gmra.mrb[0].mxu0 %v1242
  %v1456 = vpop.f32.mrb[0].mxu0
  %v1457 = vadd.f32 %v1373, %v1456
  %v1458 = vpop.f32.mrb[0].mxu0
  %v1459 = vpop.f32.mrb[0].mxu0
  %v1460 = vadd.f32 %v1373, %v1459
  %v1461 = vpop.f32.mrb[0].mxu0
  %1462 = vdwg.mxu0
  %v1463 = vmul.f32 %v1457, %v68
  %v1464 = vmul.f32 %v1460, %v73
  %v1465 = vadd.f32 %v1363, %v1463
  %v1466 = vadd.f32 %v1366, %v1464
  %v1467 = vmax.f32 %v1465, 0.0
  %v1468 = vmax.f32 %v1466, 0.0
  %v1469 = vpack.c.bf16 %v1468, %v1467
  %v1470 = vmul.f32 %v1467, %v69
  %v1471 = vmul.f32 %v1468, %v74
  %v1472 = vpack.c.bf16 %v1471, %v1470
  %v1473 = vld [vmem:[%s4 + $0x8] sm:$0xf]
  %v1474 = vld [vmem:[%s4 + $0x18] sm:$0xf]
  %v1475 = vld [vmem:[%s4 + $0x28] sm:$0xf]
  %v1476 = vld [vmem:[%s4 + $0x38] sm:$0xf]
  %v1477 = vld [vmem:[%s4 + $0x48] sm:$0xf]
  %v1478 = vld [vmem:[%s4 + $0x58] sm:$0xf]
  %v1479 = vld [vmem:[%s4 + $0x68] sm:$0xf]
  %v1480 = vld [vmem:[%s4 + $0x78] sm:$0xf]
  %v1481 = vld [vmem:[%s4 + $0x88] sm:$0xf]
  %v1482 = vld [vmem:[%s4 + $0x98] sm:$0xf]
  %v1483 = vld [vmem:[%s4 + $0xa8] sm:$0xf]
  %v1484 = vld [vmem:[%s4 + $0xb8] sm:$0xf]
  %v1485 = vld [vmem:[%s4 + $0xc8] sm:$0xf]
  %v1486 = vld [vmem:[%s4 + $0xd8] sm:$0xf]
  %v1487 = vld [vmem:[%s4 + $0xe8] sm:$0xf]
  %v1488 = vld [vmem:[%s4 + $0xf8] sm:$0xf]
  %v1489 = vld [vmem:[%s4 + $0xc] sm:$0xf]
  %v1490 = vld [vmem:[%s4 + $0x1c] sm:$0xf]
  %v1491 = vld [vmem:[%s4 + $0x2c] sm:$0xf]
  %v1492 = vld [vmem:[%s4 + $0x3c] sm:$0xf]
  %v1493 = vld [vmem:[%s4 + $0x4c] sm:$0xf]
  %v1494 = vld [vmem:[%s4 + $0x5c] sm:$0xf]
  %v1495 = vld [vmem:[%s4 + $0x6c] sm:$0xf]
  %v1496 = vld [vmem:[%s4 + $0x7c] sm:$0xf]
  %v1497 = vld [vmem:[%s4 + $0x8c] sm:$0xf]
  %v1498 = vld [vmem:[%s4 + $0x9c] sm:$0xf]
  %v1499 = vld [vmem:[%s4 + $0xac] sm:$0xf]
  %v1500 = vld [vmem:[%s4 + $0xbc] sm:$0xf]
  %v1501 = vld [vmem:[%s4 + $0xcc] sm:$0xf]
  %v1502 = vld [vmem:[%s4 + $0xdc] sm:$0xf]
  %v1503 = vld [vmem:[%s4 + $0xec] sm:$0xf]
  %v1504 = vld [vmem:[%s4 + $0xfc] sm:$0xf]
  %v1505 = vld [vmem:[%s5 + $0x4] sm:$0x1]
  %v1506 = vlaneseq
  %v1507 = vshrl.u32 %v1506, 7
  %v1508 = vsub.s32 0, %v1507
  %v1509 = vrot.slane %v1505, %v1508
  %v1526 = vunpack.c.l.b16 %v1473
  %v1527 = vunpack.c.l.b16 %v1474
  %v1528 = vunpack.c.l.b16 %v1475
  %v1529 = vunpack.c.l.b16 %v1476
  %v1530 = vunpack.c.l.b16 %v1477
  %v1531 = vunpack.c.l.b16 %v1478
  %v1532 = vunpack.c.l.b16 %v1479
  %v1533 = vunpack.c.l.b16 %v1480
  %v1534 = vunpack.c.l.b16 %v1481
  %v1535 = vunpack.c.l.b16 %v1482
  %v1536 = vunpack.c.l.b16 %v1483
  %v1537 = vunpack.c.l.b16 %v1484
  %v1538 = vunpack.c.l.b16 %v1485
  %v1539 = vunpack.c.l.b16 %v1486
  %v1540 = vunpack.c.l.b16 %v1487
  %v1541 = vunpack.c.l.b16 %v1488
  %v1542 = vpack.c.b16 %v1527, %v1526
  %v1543 = vpack.c.b16 %v1529, %v1528
  %v1544 = vpack.c.b16 %v1531, %v1530
  %v1545 = vpack.c.b16 %v1533, %v1532
  %v1546 = vpack.c.b16 %v1535, %v1534
  %v1547 = vpack.c.b16 %v1537, %v1536
  %v1548 = vpack.c.b16 %v1539, %v1538
  %v1549 = vpack.c.b16 %v1541, %v1540
  %1558 = vmatprep.subr.bf16.mxu0 0
  %1559 = vmatpush1.bf16.msra.mxu0 %v1542
  %1560 = vmatprep.subr.bf16.mxu0 0
  %1561 = vmatpush1.bf16.msra.mxu0 %v1543
  %1562 = vmatprep.subr.bf16.mxu0 0
  %1563 = vmatpush1.bf16.msra.mxu0 %v1544
  %1564 = vmatprep.subr.bf16.mxu0 0
  %1565 = vmatpush1.bf16.msra.mxu0 %v1545
  %1566 = vmatprep.subr.bf16.mxu0 0
  %1567 = vmatpush1.bf16.msra.mxu0 %v1546
  %1568 = vmatprep.subr.bf16.mxu0 0
  %1569 = vmatpush1.bf16.msra.mxu0 %v1547
  %1570 = vmatprep.subr.bf16.mxu0 0
  %1571 = vmatpush1.bf16.msra.mxu0 %v1548
  %1572 = vmatprep.subr.bf16.mxu0 0
  %1573 = vmatpush1.bf16.msra.mxu0 %v1549
  %1574 = vmatprep.subr.bf16.mxu0 0
  %1575 = vmatpush1.bf16.msra.mxu0 0
  %1576 = vmatprep.subr.bf16.mxu0 0
  %1577 = vmatpush1.bf16.msra.mxu0 0
  %1578 = vmatprep.subr.bf16.mxu0 0
  %1579 = vmatpush1.bf16.msra.mxu0 0
  %1580 = vmatprep.subr.bf16.mxu0 0
  %1581 = vmatpush1.bf16.msra.mxu0 0
  %1582 = vmatprep.subr.bf16.mxu0 0
  %1583 = vmatpush1.bf16.msra.mxu0 0
  %1584 = vmatprep.subr.bf16.mxu0 0
  %1585 = vmatpush1.bf16.msra.mxu0 0
  %1586 = vmatprep.subr.bf16.mxu0 0
  %1587 = vmatpush1.bf16.msra.mxu0 0
  %1588 = vmatprep.subr.bf16.mxu0 0
  %1589 = vmatpush1.bf16.msra.mxu0 0
  %1590 = vmatprep.mubr.bf16.mxu0 0
  %1591 = vmatmul.mubr.bf16.gmra.mrb[0].mxu0 %v1469
  %v1592 = vpop.f32.mrb[0].mxu0
  %v1593 = vadd.f32 %v1509, %v1592
  %v1594 = vpop.f32.mrb[0].mxu0
  %v1595 = vpop.f32.mrb[0].mxu0
  %v1596 = vadd.f32 %v1509, %v1595
  %v1597 = vpop.f32.mrb[0].mxu0
  %1598 = vdwg.mxu0
  %v1599 = vld [vmem:[%s5 + $0x5] sm:$0x1]
  %v1600 = vlaneseq
  %v1601 = vshrl.u32 %v1600, 7
  %v1602 = vsub.s32 0, %v1601
  %v1603 = vrot.slane %v1599, %v1602
  %v1620 = vunpack.c.l.b16 %v1489
  %v1621 = vunpack.c.l.b16 %v1490
  %v1622 = vunpack.c.l.b16 %v1491
  %v1623 = vunpack.c.l.b16 %v1492
  %v1624 = vunpack.c.l.b16 %v1493
  %v1625 = vunpack.c.l.b16 %v1494
  %v1626 = vunpack.c.l.b16 %v1495
  %v1627 = vunpack.c.l.b16 %v1496
  %v1628 = vunpack.c.l.b16 %v1497
  %v1629 = vunpack.c.l.b16 %v1498
  %v1630 = vunpack.c.l.b16 %v1499
  %v1631 = vunpack.c.l.b16 %v1500
  %v1632 = vunpack.c.l.b16 %v1501
  %v1633 = vunpack.c.l.b16 %v1502
  %v1634 = vunpack.c.l.b16 %v1503
  %v1635 = vunpack.c.l.b16 %v1504
  %v1636 = vpack.c.b16 %v1621, %v1620
  %v1637 = vpack.c.b16 %v1623, %v1622
  %v1638 = vpack.c.b16 %v1625, %v1624
  %v1639 = vpack.c.b16 %v1627, %v1626
  %v1640 = vpack.c.b16 %v1629, %v1628
  %v1641 = vpack.c.b16 %v1631, %v1630
  %v1642 = vpack.c.b16 %v1633, %v1632
  %v1643 = vpack.c.b16 %v1635, %v1634
  %1652 = vmatprep.subr.bf16.mxu0 0
  %1653 = vmatpush1.bf16.msra.mxu0 %v1636
  %1654 = vmatprep.subr.bf16.mxu0 0
  %1655 = vmatpush1.bf16.msra.mxu0 %v1637
  %1656 = vmatprep.subr.bf16.mxu0 0
  %1657 = vmatpush1.bf16.msra.mxu0 %v1638
  %1658 = vmatprep.subr.bf16.mxu0 0
  %1659 = vmatpush1.bf16.msra.mxu0 %v1639
  %1660 = vmatprep.subr.bf16.mxu0 0
  %1661 = vmatpush1.bf16.msra.mxu0 %v1640
  %1662 = vmatprep.subr.bf16.mxu0 0
  %1663 = vmatpush1.bf16.msra.mxu0 %v1641
  %1664 = vmatprep.subr.bf16.mxu0 0
  %1665 = vmatpush1.bf16.msra.mxu0 %v1642
  %1666 = vmatprep.subr.bf16.mxu0 0
  %1667 = vmatpush1.bf16.msra.mxu0 %v1643
  %1668 = vmatprep.subr.bf16.mxu0 0
  %1669 = vmatpush1.bf16.msra.mxu0 0
  %1670 = vmatprep.subr.bf16.mxu0 0
  %1671 = vmatpush1.bf16.msra.mxu0 0
  %1672 = vmatprep.subr.bf16.mxu0 0
  %1673 = vmatpush1.bf16.msra.mxu0 0
  %1674 = vmatprep.subr.bf16.mxu0 0
  %1675 = vmatpush1.bf16.msra.mxu0 0
  %1676 = vmatprep.subr.bf16.mxu0 0
  %1677 = vmatpush1.bf16.msra.mxu0 0
  %1678 = vmatprep.subr.bf16.mxu0 0
  %1679 = vmatpush1.bf16.msra.mxu0 0
  %1680 = vmatprep.subr.bf16.mxu0 0
  %1681 = vmatpush1.bf16.msra.mxu0 0
  %1682 = vmatprep.subr.bf16.mxu0 0
  %1683 = vmatpush1.bf16.msra.mxu0 0
  %1684 = vmatprep.mubr.bf16.mxu0 0
  %1685 = vmatmul.mubr.bf16.gmra.mrb[0].mxu0 %v1472
  %v1686 = vpop.f32.mrb[0].mxu0
  %v1687 = vadd.f32 %v1603, %v1686
  %v1688 = vpop.f32.mrb[0].mxu0
  %v1689 = vpop.f32.mrb[0].mxu0
  %v1690 = vadd.f32 %v1603, %v1689
  %v1691 = vpop.f32.mrb[0].mxu0
  %1692 = vdwg.mxu0
  %v1693 = vmul.f32 %v1687, %v70
  %v1694 = vmul.f32 %v1690, %v75
  %v1695 = vadd.f32 %v1593, %v1693
  %v1696 = vadd.f32 %v1596, %v1694
  %1697 = vst [vmem:[%s6] sm:$0xff] %v1695
  %1698 = vst [vmem:[%s6 + $0x8] sm:$0xff] %v1696
  // Predicated region
  $region26: #{model_pmnist_forward.3} parent=0 // pred_check
    _
  $region27: #{model_pmnist_forward.3} parent=0 // pred_check_branch
    %1700 = sbr.rel (0) target = $region29
  $region28: #{model_pmnist_forward.3} parent=0 // pred_region
    _
  $region29: #{model_pmnist_forward.3} parent=0 // pred_fallthru
    _
  // Predicated region
  $region30: #{model_pmnist_forward.3} parent=0 // pred_check
    _
  $region31: #{model_pmnist_forward.3} parent=0 // pred_check_branch
    %1702 = sbr.rel (0) target = $region33
  $region32: #{model_pmnist_forward.3} parent=0 // pred_region
    _
  $region33: #{model_pmnist_forward.3} parent=0 // pred_fallthru
    _

</llo_original>
